<compile_context>
chip_gen: v5e
topology: v5e:2x2
jax: 0.10.0
libtpu: 0.0.40
codegen_flags: <defaults>
</compile_context>

<pallas_src>
import math

import jax
import jax.numpy as jnp
from jax.experimental import pallas as pl
from jax.experimental.pallas import tpu as pltpu


def sa_gc_fused_kernel(x_ref, a_ref, w_ref, s_ref, o_ref, zcat_ref):
    """One block of B frames per grid step.

    x_ref   : (V, B*Cin)          B frames folded into the lane axis (lanes = [frame, cin])
    a_ref   : (H, V, V)           shared topology (adjacency per head)
    w_ref   : ((H+1)*Cin, Cout)   fused channel-mix weights: [W0'; ...; W_{H-1}'; Wd'], BN-scaled
    s_ref   : (1, Cout)           fused shift = bn_shift + bn_scale*sum_h b_h + bnd_shift + bnd_scale*bd
    o_ref   : (B*V, Cout)         output rows ordered (frame, joint)
    zcat_ref: (B*V, (H+1)*Cin)    VMEM scratch: concatenated graph-mix features (K=128 operand)
    """
    num_head = a_ref.shape[0]
    v_dim = a_ref.shape[1]
    c_in = w_ref.shape[0] // (num_head + 1)
    n_frames = x_ref.shape[1] // c_in

    x2 = x_ref[...]                                   # (V, B*Cin) f32
    a = a_ref[...]                                    # (H, V, V)

    # Graph mixing over joints, all B frames at once (lane-dense MXU matmuls):
    #   z_h[v, (b, c)] = sum_w A[h, v, w] * x[b, w, c]
    feats = [jnp.dot(a[h], x2, preferred_element_type=jnp.float32) for h in range(num_head)]
    feats.append(x2)                                  # identity "head" -> residual down path

    # Relayout (V, [frame, cin]) -> rows (frame, joint), lanes (head, cin).
    # Static slices + stores into VMEM scratch only (no in-kernel reshapes / concats).
    for k in range(num_head + 1):
        fk = feats[k]
        for fb in range(n_frames):
            zcat_ref[fb * v_dim:(fb + 1) * v_dim, k * c_in:(k + 1) * c_in] = \
                fk[:, fb * c_in:(fb + 1) * c_in]

    # Fused channel mixing: a single K=(H+1)*Cin matmul; conv weights, the down-path weight and
    # both (inference-mode) BatchNorm scales are already folded into w_ref on the host.
    out = jnp.dot(zcat_ref[...], w_ref[...], preferred_element_type=jnp.float32)
    out = out + s_ref[...]                            # all biases + BN shifts (one vector)
    # relu from SA_GC followed by relu from iAFFWithCustomGCN (idempotent)
    o_ref[...] = jnp.maximum(out, 0.0).astype(o_ref.dtype)


def iaff_with_custom_gcn(x, params, *, frames_per_block=32):
    """x: (N, Cin, T, V) float32 (NCHW, torch convention). Returns (N, Cout, T, V)."""
    N, Cin, T, V = x.shape
    A = params["A"].astype(jnp.float32)               # (H, V, V)
    W = params["W"].astype(jnp.float32)               # (H, Cout, Cin)
    b = params["b"].astype(jnp.float32)               # (H, Cout)
    Wd = params["Wd"].astype(jnp.float32)             # (Cout, Cin)
    bd = params["bd"].astype(jnp.float32)             # (Cout,)
    H, Cout = W.shape[0], W.shape[1]
    eps = 1e-5

    # Fold both BatchNorms (inference mode) and all biases into the weights / one shift vector.
    bn_scale = params["bn_gamma"] / jnp.sqrt(params["bn_var"] + eps)
    bn_shift = params["bn_beta"] - params["bn_mean"] * bn_scale
    bnd_scale = params["bnd_gamma"] / jnp.sqrt(params["bnd_var"] + eps)
    bnd_shift = params["bnd_beta"] - params["bnd_mean"] * bnd_scale
    w_heads = [W[h].T * bn_scale[None, :] for h in range(H)]          # each (Cin, Cout)
    w_down = Wd.T * bnd_scale[None, :]                                # (Cin, Cout)
    w_cat = jnp.concatenate(w_heads + [w_down], axis=0).astype(jnp.float32)   # ((H+1)*Cin, Cout)
    shift = (bn_shift + bn_scale * jnp.sum(b, axis=0)
             + bnd_shift + bnd_scale * bd).reshape(1, Cout).astype(jnp.float32)

    # Frame-block size: multiple of 8 so B*V rows and B*Cin lanes stay tile-aligned; shrink when
    # the batch is small so the grid still has >= 2 steps (keeps both v7x TensorCores busy).
    NT = N * T
    B = frames_per_block
    while B > 8 and NT <= B:
        B //= 2
    B = max(8, (B // 8) * 8)
    assert (B * Cin) % 128 == 0, "frame block must give 128-aligned lanes"
    NT_pad = ((NT + B - 1) // B) * B
    G = NT_pad // B

    # Layout glue: NCHW -> (V, NT_pad, Cin) -> (V, NT_pad*Cin); frames folded into the lane axis.
    xr = jnp.transpose(x, (3, 0, 2, 1)).reshape(V, NT, Cin).astype(jnp.float32)
    if NT_pad != NT:
        xr = jnp.pad(xr, ((0, 0), (0, NT_pad - NT), (0, 0)))
    xr = xr.reshape(V, NT_pad * Cin)

    out = pl.pallas_call(
        sa_gc_fused_kernel,
        out_shape=jax.ShapeDtypeStruct((G, B * V, Cout), jnp.float32),
        grid=(G,),
        in_specs=[
            pl.BlockSpec((V, B * Cin), lambda i: (0, i)),          # B frames per step (lane-dense)
            pl.BlockSpec((H, V, V), lambda i: (0, 0, 0)),          # constant blocks below
            pl.BlockSpec(((H + 1) * Cin, Cout), lambda i: (0, 0)),
            pl.BlockSpec((1, Cout), lambda i: (0, 0)),
        ],
        out_specs=pl.BlockSpec((None, B * V, Cout), lambda i: (i, 0, 0)),
        scratch_shapes=[pltpu.VMEM((B * V, (H + 1) * Cin), jnp.float32)],
        compiler_params=pltpu.CompilerParams(dimension_semantics=("parallel",)),
    )(xr, A, w_cat, shift)

    # Glue: (G, B*V, Cout) with rows ordered (frame, joint) -> NCHW (N, Cout, T, V).
    out = out.reshape(NT_pad, V, Cout)[:NT]
    return jnp.transpose(out.reshape(N, T, V, Cout), (0, 3, 1, 2))


def reference_forward(x, params):
    """Plain-JAX mirror of the PyTorch forward (inference-mode BN), NCHW in/out."""
    N, Cin, T, V = x.shape
    A, W, b, Wd, bd = params["A"], params["W"], params["b"], params["Wd"], params["bd"]
    H, Cout = W.shape[0], W.shape[1]
    eps = 1e-5
    feat = jnp.transpose(x, (0, 2, 3, 1)).reshape(N * T, V, Cin)      # (nt, v, c)
    out = jnp.zeros((N * T, V, Cout), jnp.float32)
    for h in range(H):
        z = jnp.einsum("vw,bwc->bvc", A[h], feat)                     # graph mix
        y = jnp.einsum("bvc,oc->bvo", z, W[h]) + b[h]                 # 1x1 conv
        out = out + y
    out = (out - params["bn_mean"]) / jnp.sqrt(params["bn_var"] + eps) * params["bn_gamma"] \
        + params["bn_beta"]
    dn = jnp.einsum("bvc,oc->bvo", feat, Wd) + bd
    dn = (dn - params["bnd_mean"]) / jnp.sqrt(params["bnd_var"] + eps) * params["bnd_gamma"] \
        + params["bnd_beta"]
    out = jax.nn.relu(out + dn)
    out = jax.nn.relu(out)                                            # outer iAFF relu
    return jnp.transpose(out.reshape(N, T, V, Cout), (0, 3, 1, 2))


if __name__ == "__main__":
    # Small shapes consistent with the module defaults: channels=32, gcn_channels=64, 3 heads.
    N, Cin, T, V = 2, 32, 8, 25
    H, Cout = 3, 64

    key = jax.random.PRNGKey(0)
    ks = jax.random.split(key, 14)

    x = jax.random.normal(ks[0], (N, Cin, T, V), jnp.float32)
    params = {
        "A": 0.1 * jax.random.normal(ks[1], (H, V, V), jnp.float32),
        "W": (1.0 / math.sqrt(Cin)) * jax.random.normal(ks[2], (H, Cout, Cin), jnp.float32),
        "b": 0.1 * jax.random.normal(ks[3], (H, Cout), jnp.float32),
        "Wd": (1.0 / math.sqrt(Cin)) * jax.random.normal(ks[4], (Cout, Cin), jnp.float32),
        "bd": 0.1 * jax.random.normal(ks[5], (Cout,), jnp.float32),
        "bn_gamma": 1.0 + 0.1 * jax.random.normal(ks[6], (Cout,), jnp.float32),
        "bn_beta": 0.1 * jax.random.normal(ks[7], (Cout,), jnp.float32),
        "bn_mean": 0.1 * jax.random.normal(ks[8], (Cout,), jnp.float32),
        "bn_var": 1.0 + 0.1 * jnp.abs(jax.random.normal(ks[9], (Cout,), jnp.float32)),
        "bnd_gamma": 1.0 + 0.1 * jax.random.normal(ks[10], (Cout,), jnp.float32),
        "bnd_beta": 0.1 * jax.random.normal(ks[11], (Cout,), jnp.float32),
        "bnd_mean": 0.1 * jax.random.normal(ks[12], (Cout,), jnp.float32),
        "bnd_var": 1.0 + 0.1 * jnp.abs(jax.random.normal(ks[13], (Cout,), jnp.float32)),
    }

    out = iaff_with_custom_gcn(x, params)
    out = jax.block_until_ready(out)

    ref = reference_forward(x, params)
    assert out.shape == (N, Cout, T, V)
    assert jnp.allclose(out, ref, rtol=1e-3, atol=1e-3), float(jnp.max(jnp.abs(out - ref)))

    print("KERNEL_OK")
</pallas_src>

<mosaic_0001>
module attributes {stable_mosaic.version = 11 : i64} {
  func.func @sa_gc_fused_kernel(%arg0: i32, %arg1: memref<25x256xf32, #tpu.memory_space<vmem>>, %arg2: memref<3x25x25xf32, #tpu.memory_space<vmem>>, %arg3: memref<128x64xf32, #tpu.memory_space<vmem>>, %arg4: memref<1x64xf32, #tpu.memory_space<vmem>>, %arg5: memref<1x200x64xf32, #tpu.memory_space<vmem>>, %arg6: memref<200x128xf32, #tpu.memory_space<vmem>>) attributes {dimension_semantics = [#tpu.dimension_semantics<parallel>], iteration_bounds = array<i64: 2>, scalar_prefetch = 0 : i64, scratch_operands = 1 : i64, tpu.core_type = #tpu.core_type<tc>, window_params = [{transform_indices = @transform_0, window_bounds = array<i64: 25, 256>}, {pipeline_mode = #tpu.pipeline_mode<synchronous>, transform_indices = @transform_1, window_bounds = array<i64: 3, 25, 25>}, {pipeline_mode = #tpu.pipeline_mode<synchronous>, transform_indices = @transform_2, window_bounds = array<i64: 128, 64>}, {pipeline_mode = #tpu.pipeline_mode<synchronous>, transform_indices = @transform_3, window_bounds = array<i64: 1, 64>}, {transform_indices = @transform_4, window_bounds = array<i64: 1, 200, 64>}]} {
    %c0 = arith.constant 0 : index
    %c0_0 = arith.constant 0 : index
    %0 = vector.load %arg1[%c0, %c0_0] : memref<25x256xf32, #tpu.memory_space<vmem>>, vector<25x256xf32>
    %c0_1 = arith.constant 0 : index
    %c0_2 = arith.constant 0 : index
    %c0_3 = arith.constant 0 : index
    %1 = vector.load %arg2[%c0_1, %c0_2, %c0_3] : memref<3x25x25xf32, #tpu.memory_space<vmem>>, vector<3x25x25xf32>
    %2 = vector.extract_strided_slice %1 {offsets = [0, 0, 0], sizes = [1, 25, 25], strides = [1, 1, 1]} : vector<3x25x25xf32> to vector<1x25x25xf32>
    %3 = vector.shape_cast %2 : vector<1x25x25xf32> to vector<25x25xf32>
    %cst = arith.constant dense<0.000000e+00> : vector<25x256xf32>
    %4 = tpu.matmul %3, %0, %cst {dimension_numbers = #tpu.dot_dimension_numbers<[1], [0], [0], [1], [0, 0, 1, 1], [], []>} : vector<25x25xf32>, vector<25x256xf32>, vector<25x256xf32> -> vector<25x256xf32>
    %5 = vector.extract_strided_slice %1 {offsets = [1, 0, 0], sizes = [1, 25, 25], strides = [1, 1, 1]} : vector<3x25x25xf32> to vector<1x25x25xf32>
    %6 = vector.shape_cast %5 : vector<1x25x25xf32> to vector<25x25xf32>
    %cst_4 = arith.constant dense<0.000000e+00> : vector<25x256xf32>
    %7 = tpu.matmul %6, %0, %cst_4 {dimension_numbers = #tpu.dot_dimension_numbers<[1], [0], [0], [1], [0, 0, 1, 1], [], []>} : vector<25x25xf32>, vector<25x256xf32>, vector<25x256xf32> -> vector<25x256xf32>
    %8 = vector.extract_strided_slice %1 {offsets = [2, 0, 0], sizes = [1, 25, 25], strides = [1, 1, 1]} : vector<3x25x25xf32> to vector<1x25x25xf32>
    %9 = vector.shape_cast %8 : vector<1x25x25xf32> to vector<25x25xf32>
    %cst_5 = arith.constant dense<0.000000e+00> : vector<25x256xf32>
    %10 = tpu.matmul %9, %0, %cst_5 {dimension_numbers = #tpu.dot_dimension_numbers<[1], [0], [0], [1], [0, 0, 1, 1], [], []>} : vector<25x25xf32>, vector<25x256xf32>, vector<25x256xf32> -> vector<25x256xf32>
    %11 = vector.extract_strided_slice %4 {offsets = [0, 0], sizes = [25, 32], strides = [1, 1]} : vector<25x256xf32> to vector<25x32xf32>
    %c0_6 = arith.constant 0 : index
    %c0_7 = arith.constant 0 : index
    %12 = vector.load %arg6[%c0_6, %c0_7] : memref<200x128xf32, #tpu.memory_space<vmem>>, vector<25x32xf32>
    tpu.vector_store %arg6[%c0_6, %c0_7], %11 {strides = array<i32>} : memref<200x128xf32, #tpu.memory_space<vmem>>, vector<25x32xf32>,
    %13 = vector.extract_strided_slice %4 {offsets = [0, 32], sizes = [25, 32], strides = [1, 1]} : vector<25x256xf32> to vector<25x32xf32>
    %c25 = arith.constant 25 : index
    %c0_8 = arith.constant 0 : index
    %14 = vector.load %arg6[%c25, %c0_8] : memref<200x128xf32, #tpu.memory_space<vmem>>, vector<25x32xf32>
    tpu.vector_store %arg6[%c25, %c0_8], %13 {strides = array<i32>} : memref<200x128xf32, #tpu.memory_space<vmem>>, vector<25x32xf32>,
    %15 = vector.extract_strided_slice %4 {offsets = [0, 64], sizes = [25, 32], strides = [1, 1]} : vector<25x256xf32> to vector<25x32xf32>
    %c50 = arith.constant 50 : index
    %c0_9 = arith.constant 0 : index
    %16 = vector.load %arg6[%c50, %c0_9] : memref<200x128xf32, #tpu.memory_space<vmem>>, vector<25x32xf32>
    tpu.vector_store %arg6[%c50, %c0_9], %15 {strides = array<i32>} : memref<200x128xf32, #tpu.memory_space<vmem>>, vector<25x32xf32>,
    %17 = vector.extract_strided_slice %4 {offsets = [0, 96], sizes = [25, 32], strides = [1, 1]} : vector<25x256xf32> to vector<25x32xf32>
    %c75 = arith.constant 75 : index
    %c0_10 = arith.constant 0 : index
    %18 = vector.load %arg6[%c75, %c0_10] : memref<200x128xf32, #tpu.memory_space<vmem>>, vector<25x32xf32>
    tpu.vector_store %arg6[%c75, %c0_10], %17 {strides = array<i32>} : memref<200x128xf32, #tpu.memory_space<vmem>>, vector<25x32xf32>,
    %19 = vector.extract_strided_slice %4 {offsets = [0, 128], sizes = [25, 32], strides = [1, 1]} : vector<25x256xf32> to vector<25x32xf32>
    %c100 = arith.constant 100 : index
    %c0_11 = arith.constant 0 : index
    %20 = vector.load %arg6[%c100, %c0_11] : memref<200x128xf32, #tpu.memory_space<vmem>>, vector<25x32xf32>
    tpu.vector_store %arg6[%c100, %c0_11], %19 {strides = array<i32>} : memref<200x128xf32, #tpu.memory_space<vmem>>, vector<25x32xf32>,
    %21 = vector.extract_strided_slice %4 {offsets = [0, 160], sizes = [25, 32], strides = [1, 1]} : vector<25x256xf32> to vector<25x32xf32>
    %c125 = arith.constant 125 : index
    %c0_12 = arith.constant 0 : index
    %22 = vector.load %arg6[%c125, %c0_12] : memref<200x128xf32, #tpu.memory_space<vmem>>, vector<25x32xf32>
    tpu.vector_store %arg6[%c125, %c0_12], %21 {strides = array<i32>} : memref<200x128xf32, #tpu.memory_space<vmem>>, vector<25x32xf32>,
    %23 = vector.extract_strided_slice %4 {offsets = [0, 192], sizes = [25, 32], strides = [1, 1]} : vector<25x256xf32> to vector<25x32xf32>
    %c150 = arith.constant 150 : index
    %c0_13 = arith.constant 0 : index
    %24 = vector.load %arg6[%c150, %c0_13] : memref<200x128xf32, #tpu.memory_space<vmem>>, vector<25x32xf32>
    tpu.vector_store %arg6[%c150, %c0_13], %23 {strides = array<i32>} : memref<200x128xf32, #tpu.memory_space<vmem>>, vector<25x32xf32>,
    %25 = vector.extract_strided_slice %4 {offsets = [0, 224], sizes = [25, 32], strides = [1, 1]} : vector<25x256xf32> to vector<25x32xf32>
    %c175 = arith.constant 175 : index
    %c0_14 = arith.constant 0 : index
    %26 = vector.load %arg6[%c175, %c0_14] : memref<200x128xf32, #tpu.memory_space<vmem>>, vector<25x32xf32>
    tpu.vector_store %arg6[%c175, %c0_14], %25 {strides = array<i32>} : memref<200x128xf32, #tpu.memory_space<vmem>>, vector<25x32xf32>,
    %27 = vector.extract_strided_slice %7 {offsets = [0, 0], sizes = [25, 32], strides = [1, 1]} : vector<25x256xf32> to vector<25x32xf32>
    %c0_15 = arith.constant 0 : index
    %c32 = arith.constant 32 : index
    %28 = vector.load %arg6[%c0_15, %c32] : memref<200x128xf32, #tpu.memory_space<vmem>>, vector<25x32xf32>
    tpu.vector_store %arg6[%c0_15, %c32], %27 {strides = array<i32>} : memref<200x128xf32, #tpu.memory_space<vmem>>, vector<25x32xf32>,
    %29 = vector.extract_strided_slice %7 {offsets = [0, 32], sizes = [25, 32], strides = [1, 1]} : vector<25x256xf32> to vector<25x32xf32>
    %c25_16 = arith.constant 25 : index
    %c32_17 = arith.constant 32 : index
    %30 = vector.load %arg6[%c25_16, %c32_17] : memref<200x128xf32, #tpu.memory_space<vmem>>, vector<25x32xf32>
    tpu.vector_store %arg6[%c25_16, %c32_17], %29 {strides = array<i32>} : memref<200x128xf32, #tpu.memory_space<vmem>>, vector<25x32xf32>,
    %31 = vector.extract_strided_slice %7 {offsets = [0, 64], sizes = [25, 32], strides = [1, 1]} : vector<25x256xf32> to vector<25x32xf32>
    %c50_18 = arith.constant 50 : index
    %c32_19 = arith.constant 32 : index
    %32 = vector.load %arg6[%c50_18, %c32_19] : memref<200x128xf32, #tpu.memory_space<vmem>>, vector<25x32xf32>
    tpu.vector_store %arg6[%c50_18, %c32_19], %31 {strides = array<i32>} : memref<200x128xf32, #tpu.memory_space<vmem>>, vector<25x32xf32>,
    %33 = vector.extract_strided_slice %7 {offsets = [0, 96], sizes = [25, 32], strides = [1, 1]} : vector<25x256xf32> to vector<25x32xf32>
    %c75_20 = arith.constant 75 : index
    %c32_21 = arith.constant 32 : index
    %34 = vector.load %arg6[%c75_20, %c32_21] : memref<200x128xf32, #tpu.memory_space<vmem>>, vector<25x32xf32>
    tpu.vector_store %arg6[%c75_20, %c32_21], %33 {strides = array<i32>} : memref<200x128xf32, #tpu.memory_space<vmem>>, vector<25x32xf32>,
    %35 = vector.extract_strided_slice %7 {offsets = [0, 128], sizes = [25, 32], strides = [1, 1]} : vector<25x256xf32> to vector<25x32xf32>
    %c100_22 = arith.constant 100 : index
    %c32_23 = arith.constant 32 : index
    %36 = vector.load %arg6[%c100_22, %c32_23] : memref<200x128xf32, #tpu.memory_space<vmem>>, vector<25x32xf32>
    tpu.vector_store %arg6[%c100_22, %c32_23], %35 {strides = array<i32>} : memref<200x128xf32, #tpu.memory_space<vmem>>, vector<25x32xf32>,
    %37 = vector.extract_strided_slice %7 {offsets = [0, 160], sizes = [25, 32], strides = [1, 1]} : vector<25x256xf32> to vector<25x32xf32>
    %c125_24 = arith.constant 125 : index
    %c32_25 = arith.constant 32 : index
    %38 = vector.load %arg6[%c125_24, %c32_25] : memref<200x128xf32, #tpu.memory_space<vmem>>, vector<25x32xf32>
    tpu.vector_store %arg6[%c125_24, %c32_25], %37 {strides = array<i32>} : memref<200x128xf32, #tpu.memory_space<vmem>>, vector<25x32xf32>,
    %39 = vector.extract_strided_slice %7 {offsets = [0, 192], sizes = [25, 32], strides = [1, 1]} : vector<25x256xf32> to vector<25x32xf32>
    %c150_26 = arith.constant 150 : index
    %c32_27 = arith.constant 32 : index
    %40 = vector.load %arg6[%c150_26, %c32_27] : memref<200x128xf32, #tpu.memory_space<vmem>>, vector<25x32xf32>
    tpu.vector_store %arg6[%c150_26, %c32_27], %39 {strides = array<i32>} : memref<200x128xf32, #tpu.memory_space<vmem>>, vector<25x32xf32>,
    %41 = vector.extract_strided_slice %7 {offsets = [0, 224], sizes = [25, 32], strides = [1, 1]} : vector<25x256xf32> to vector<25x32xf32>
    %c175_28 = arith.constant 175 : index
    %c32_29 = arith.constant 32 : index
    %42 = vector.load %arg6[%c175_28, %c32_29] : memref<200x128xf32, #tpu.memory_space<vmem>>, vector<25x32xf32>
    tpu.vector_store %arg6[%c175_28, %c32_29], %41 {strides = array<i32>} : memref<200x128xf32, #tpu.memory_space<vmem>>, vector<25x32xf32>,
    %43 = vector.extract_strided_slice %10 {offsets = [0, 0], sizes = [25, 32], strides = [1, 1]} : vector<25x256xf32> to vector<25x32xf32>
    %c0_30 = arith.constant 0 : index
    %c64 = arith.constant 64 : index
    %44 = vector.load %arg6[%c0_30, %c64] : memref<200x128xf32, #tpu.memory_space<vmem>>, vector<25x32xf32>
    tpu.vector_store %arg6[%c0_30, %c64], %43 {strides = array<i32>} : memref<200x128xf32, #tpu.memory_space<vmem>>, vector<25x32xf32>,
    %45 = vector.extract_strided_slice %10 {offsets = [0, 32], sizes = [25, 32], strides = [1, 1]} : vector<25x256xf32> to vector<25x32xf32>
    %c25_31 = arith.constant 25 : index
    %c64_32 = arith.constant 64 : index
    %46 = vector.load %arg6[%c25_31, %c64_32] : memref<200x128xf32, #tpu.memory_space<vmem>>, vector<25x32xf32>
    tpu.vector_store %arg6[%c25_31, %c64_32], %45 {strides = array<i32>} : memref<200x128xf32, #tpu.memory_space<vmem>>, vector<25x32xf32>,
    %47 = vector.extract_strided_slice %10 {offsets = [0, 64], sizes = [25, 32], strides = [1, 1]} : vector<25x256xf32> to vector<25x32xf32>
    %c50_33 = arith.constant 50 : index
    %c64_34 = arith.constant 64 : index
    %48 = vector.load %arg6[%c50_33, %c64_34] : memref<200x128xf32, #tpu.memory_space<vmem>>, vector<25x32xf32>
    tpu.vector_store %arg6[%c50_33, %c64_34], %47 {strides = array<i32>} : memref<200x128xf32, #tpu.memory_space<vmem>>, vector<25x32xf32>,
    %49 = vector.extract_strided_slice %10 {offsets = [0, 96], sizes = [25, 32], strides = [1, 1]} : vector<25x256xf32> to vector<25x32xf32>
    %c75_35 = arith.constant 75 : index
    %c64_36 = arith.constant 64 : index
    %50 = vector.load %arg6[%c75_35, %c64_36] : memref<200x128xf32, #tpu.memory_space<vmem>>, vector<25x32xf32>
    tpu.vector_store %arg6[%c75_35, %c64_36], %49 {strides = array<i32>} : memref<200x128xf32, #tpu.memory_space<vmem>>, vector<25x32xf32>,
    %51 = vector.extract_strided_slice %10 {offsets = [0, 128], sizes = [25, 32], strides = [1, 1]} : vector<25x256xf32> to vector<25x32xf32>
    %c100_37 = arith.constant 100 : index
    %c64_38 = arith.constant 64 : index
    %52 = vector.load %arg6[%c100_37, %c64_38] : memref<200x128xf32, #tpu.memory_space<vmem>>, vector<25x32xf32>
    tpu.vector_store %arg6[%c100_37, %c64_38], %51 {strides = array<i32>} : memref<200x128xf32, #tpu.memory_space<vmem>>, vector<25x32xf32>,
    %53 = vector.extract_strided_slice %10 {offsets = [0, 160], sizes = [25, 32], strides = [1, 1]} : vector<25x256xf32> to vector<25x32xf32>
    %c125_39 = arith.constant 125 : index
    %c64_40 = arith.constant 64 : index
    %54 = vector.load %arg6[%c125_39, %c64_40] : memref<200x128xf32, #tpu.memory_space<vmem>>, vector<25x32xf32>
    tpu.vector_store %arg6[%c125_39, %c64_40], %53 {strides = array<i32>} : memref<200x128xf32, #tpu.memory_space<vmem>>, vector<25x32xf32>,
    %55 = vector.extract_strided_slice %10 {offsets = [0, 192], sizes = [25, 32], strides = [1, 1]} : vector<25x256xf32> to vector<25x32xf32>
    %c150_41 = arith.constant 150 : index
    %c64_42 = arith.constant 64 : index
    %56 = vector.load %arg6[%c150_41, %c64_42] : memref<200x128xf32, #tpu.memory_space<vmem>>, vector<25x32xf32>
    tpu.vector_store %arg6[%c150_41, %c64_42], %55 {strides = array<i32>} : memref<200x128xf32, #tpu.memory_space<vmem>>, vector<25x32xf32>,
    %57 = vector.extract_strided_slice %10 {offsets = [0, 224], sizes = [25, 32], strides = [1, 1]} : vector<25x256xf32> to vector<25x32xf32>
    %c175_43 = arith.constant 175 : index
    %c64_44 = arith.constant 64 : index
    %58 = vector.load %arg6[%c175_43, %c64_44] : memref<200x128xf32, #tpu.memory_space<vmem>>, vector<25x32xf32>
    tpu.vector_store %arg6[%c175_43, %c64_44], %57 {strides = array<i32>} : memref<200x128xf32, #tpu.memory_space<vmem>>, vector<25x32xf32>,
    %59 = vector.extract_strided_slice %0 {offsets = [0, 0], sizes = [25, 32], strides = [1, 1]} : vector<25x256xf32> to vector<25x32xf32>
    %c0_45 = arith.constant 0 : index
    %c96 = arith.constant 96 : index
    %60 = vector.load %arg6[%c0_45, %c96] : memref<200x128xf32, #tpu.memory_space<vmem>>, vector<25x32xf32>
    tpu.vector_store %arg6[%c0_45, %c96], %59 {strides = array<i32>} : memref<200x128xf32, #tpu.memory_space<vmem>>, vector<25x32xf32>,
    %61 = vector.extract_strided_slice %0 {offsets = [0, 32], sizes = [25, 32], strides = [1, 1]} : vector<25x256xf32> to vector<25x32xf32>
    %c25_46 = arith.constant 25 : index
    %c96_47 = arith.constant 96 : index
    %62 = vector.load %arg6[%c25_46, %c96_47] : memref<200x128xf32, #tpu.memory_space<vmem>>, vector<25x32xf32>
    tpu.vector_store %arg6[%c25_46, %c96_47], %61 {strides = array<i32>} : memref<200x128xf32, #tpu.memory_space<vmem>>, vector<25x32xf32>,
    %63 = vector.extract_strided_slice %0 {offsets = [0, 64], sizes = [25, 32], strides = [1, 1]} : vector<25x256xf32> to vector<25x32xf32>
    %c50_48 = arith.constant 50 : index
    %c96_49 = arith.constant 96 : index
    %64 = vector.load %arg6[%c50_48, %c96_49] : memref<200x128xf32, #tpu.memory_space<vmem>>, vector<25x32xf32>
    tpu.vector_store %arg6[%c50_48, %c96_49], %63 {strides = array<i32>} : memref<200x128xf32, #tpu.memory_space<vmem>>, vector<25x32xf32>,
    %65 = vector.extract_strided_slice %0 {offsets = [0, 96], sizes = [25, 32], strides = [1, 1]} : vector<25x256xf32> to vector<25x32xf32>
    %c75_50 = arith.constant 75 : index
    %c96_51 = arith.constant 96 : index
    %66 = vector.load %arg6[%c75_50, %c96_51] : memref<200x128xf32, #tpu.memory_space<vmem>>, vector<25x32xf32>
    tpu.vector_store %arg6[%c75_50, %c96_51], %65 {strides = array<i32>} : memref<200x128xf32, #tpu.memory_space<vmem>>, vector<25x32xf32>,
    %67 = vector.extract_strided_slice %0 {offsets = [0, 128], sizes = [25, 32], strides = [1, 1]} : vector<25x256xf32> to vector<25x32xf32>
    %c100_52 = arith.constant 100 : index
    %c96_53 = arith.constant 96 : index
    %68 = vector.load %arg6[%c100_52, %c96_53] : memref<200x128xf32, #tpu.memory_space<vmem>>, vector<25x32xf32>
    tpu.vector_store %arg6[%c100_52, %c96_53], %67 {strides = array<i32>} : memref<200x128xf32, #tpu.memory_space<vmem>>, vector<25x32xf32>,
    %69 = vector.extract_strided_slice %0 {offsets = [0, 160], sizes = [25, 32], strides = [1, 1]} : vector<25x256xf32> to vector<25x32xf32>
    %c125_54 = arith.constant 125 : index
    %c96_55 = arith.constant 96 : index
    %70 = vector.load %arg6[%c125_54, %c96_55] : memref<200x128xf32, #tpu.memory_space<vmem>>, vector<25x32xf32>
    tpu.vector_store %arg6[%c125_54, %c96_55], %69 {strides = array<i32>} : memref<200x128xf32, #tpu.memory_space<vmem>>, vector<25x32xf32>,
    %71 = vector.extract_strided_slice %0 {offsets = [0, 192], sizes = [25, 32], strides = [1, 1]} : vector<25x256xf32> to vector<25x32xf32>
    %c150_56 = arith.constant 150 : index
    %c96_57 = arith.constant 96 : index
    %72 = vector.load %arg6[%c150_56, %c96_57] : memref<200x128xf32, #tpu.memory_space<vmem>>, vector<25x32xf32>
    tpu.vector_store %arg6[%c150_56, %c96_57], %71 {strides = array<i32>} : memref<200x128xf32, #tpu.memory_space<vmem>>, vector<25x32xf32>,
    %73 = vector.extract_strided_slice %0 {offsets = [0, 224], sizes = [25, 32], strides = [1, 1]} : vector<25x256xf32> to vector<25x32xf32>
    %c175_58 = arith.constant 175 : index
    %c96_59 = arith.constant 96 : index
    %74 = vector.load %arg6[%c175_58, %c96_59] : memref<200x128xf32, #tpu.memory_space<vmem>>, vector<25x32xf32>
    tpu.vector_store %arg6[%c175_58, %c96_59], %73 {strides = array<i32>} : memref<200x128xf32, #tpu.memory_space<vmem>>, vector<25x32xf32>,
    %c0_60 = arith.constant 0 : index
    %c0_61 = arith.constant 0 : index
    %75 = vector.load %arg6[%c0_60, %c0_61] : memref<200x128xf32, #tpu.memory_space<vmem>>, vector<200x128xf32>
    %c0_62 = arith.constant 0 : index
    %c0_63 = arith.constant 0 : index
    %76 = vector.load %arg3[%c0_62, %c0_63] : memref<128x64xf32, #tpu.memory_space<vmem>>, vector<128x64xf32>
    %cst_64 = arith.constant dense<0.000000e+00> : vector<200x64xf32>
    %77 = tpu.matmul %75, %76, %cst_64 {dimension_numbers = #tpu.dot_dimension_numbers<[1], [0], [0], [1], [0, 0, 1, 1], [], []>} : vector<200x128xf32>, vector<128x64xf32>, vector<200x64xf32> -> vector<200x64xf32>
    %c0_65 = arith.constant 0 : index
    %c0_66 = arith.constant 0 : index
    %78 = vector.load %arg4[%c0_65, %c0_66] : memref<1x64xf32, #tpu.memory_space<vmem>>, vector<1x64xf32>
    %79 = vector.broadcast %78 : vector<1x64xf32> to vector<200x64xf32>
    %80 = arith.addf %77, %79 : vector<200x64xf32>
    %cst_67 = arith.constant 0.000000e+00 : f32
    %81 = vector.broadcast %cst_67 : f32 to vector<200x64xf32>
    %82 = arith.maximumf %80, %81 : vector<200x64xf32>
    %c0_68 = arith.constant 0 : index
    %c0_69 = arith.constant 0 : index
    %c0_70 = arith.constant 0 : index
    %83 = vector.load %arg5[%c0_68, %c0_69, %c0_70] : memref<1x200x64xf32, #tpu.memory_space<vmem>>, vector<1x200x64xf32>
    %84 = vector.shape_cast %83 : vector<1x200x64xf32> to vector<200x64xf32>
    %85 = vector.shape_cast %82 : vector<200x64xf32> to vector<1x200x64xf32>
    tpu.vector_store %arg5[%c0_68, %c0_69, %c0_70], %85 {strides = array<i32>} : memref<1x200x64xf32, #tpu.memory_space<vmem>>, vector<1x200x64xf32>,
    return
  }
  func.func @transform_0(%arg0: i32) -> (i32, i32) {
    %c0_i32 = arith.constant 0 : i32
    %c0_i32_0 = arith.constant 0 : i32
    return %c0_i32, %arg0 : i32, i32
  }
  func.func @transform_1(%arg0: i32) -> (i32, i32, i32) {
    %c0_i32 = arith.constant 0 : i32
    %c0_i32_0 = arith.constant 0 : i32
    %c0_i32_1 = arith.constant 0 : i32
    %c0_i32_2 = arith.constant 0 : i32
    return %c0_i32, %c0_i32_0, %c0_i32_1 : i32, i32, i32
  }
  func.func @transform_2(%arg0: i32) -> (i32, i32) {
    %c0_i32 = arith.constant 0 : i32
    %c0_i32_0 = arith.constant 0 : i32
    %c0_i32_1 = arith.constant 0 : i32
    return %c0_i32, %c0_i32_0 : i32, i32
  }
  func.func @transform_3(%arg0: i32) -> (i32, i32) {
    %c0_i32 = arith.constant 0 : i32
    %c0_i32_0 = arith.constant 0 : i32
    %c0_i32_1 = arith.constant 0 : i32
    return %c0_i32, %c0_i32_0 : i32, i32
  }
  func.func @transform_4(%arg0: i32) -> (i32, i32, i32) {
    %c0_i32 = arith.constant 0 : i32
    %c0_i32_0 = arith.constant 0 : i32
    %c0_i32_1 = arith.constant 0 : i32
    return %arg0, %c0_i32, %c0_i32_0 : i32, i32, i32
  }
}

</mosaic_0001>

<llo_original>
// kernel: tpu_custom_call.1
$region0: #{tpu_custom_call.1}
  #allocation0 [shape = 'u32[]', space=smem, size = 0x4, offset = 0x4, fixed_abs, tag = 'smem constant byte address 0x4 - core index']
  #allocation1 [shape = 'u32[72,128]{1,0:T(1,128)}', space=vmem, size = 0x9000, scoped, tag = 'internal scratch']
  #allocation2 [shape = 'f32[200,128]{1,0:T(8,128)}', space=vmem, size = 0x19000, scoped, tag = 'scratch operand']
  %s0 = inlined_call_operand.vmem [shape: f32[25,512], index: 0, kind: input, shape index: {}]
  %s1 = inlined_call_operand.hbm [shape: f32[3,25,25], index: 1, kind: input, shape index: {}]
  %s2 = inlined_call_operand.vmem [shape: f32[128,64], index: 2, kind: input, shape index: {}]
  %s3 = inlined_call_operand.vmem [shape: f32[1,64], index: 3, kind: input, shape index: {}]
  %s4 = inlined_call_operand.vmem [shape: f32[2,200,64], index: 4, kind: output, shape index: {}]
  %s5 = sld [smem:[#allocation0]]
  $region76: #{tpu_custom_call.1} parent=0
    _
  %s7 = ssub.s32 1, %s5
  %s8 = scalar_select 0, %s7, %s5
  $region1: #{tpu_custom_call.1} parent=0
    #allocation3 [shape = 'u8[65536]{0}', space=vmem, size = 0x10000, scoped, tag = 'input window, operand 0']
    #allocation4 [shape = 'u8[49152]{0}', space=vmem, size = 0xc000, scoped, tag = 'input window, operand 1, single buffered']
    #allocation5 [shape = 's32[2]{0}', space=sflag, size = 0x8, scoped, tag = 'scoped memory for tpu_custom_call.1']
    %9 = vsyncpa [#allocation5], 0
    loop: start=0, step=1, limit=4
    $region2: #{tpu_custom_call.1} parent=1 // loop_pre_header
      _
    $region3: #{tpu_custom_call.1} parent=1 // loop_header
      %s11 = sphi 0, %s15
      %p12 = scmp.ge.s32.totalorder %s11, 4
      %s21 = sphi 0, %s23
      %s24 = sphi 0, %s21
      %s25 = sphi 0, %s24
      %s41 = sphi 0, %s25
      %s45 = sphi 0, %s45
      %s47 = sphi 0, %s45
      %s48 = sphi 0, %s47
      %s62 = sphi 0, %s48
      %s66 = sphi 0, %s66
      %s68 = sphi 0, %s66
      %s69 = sphi 0, %s68
      %s83 = sphi 0, %s69
      %s87 = sphi 0, %s87
      %s89 = sphi 0, %s87
      %s90 = sphi 0, %s89
      %s104 = sphi 0, %s90
      %s110 = sphi 0, %s112
      %s113 = sphi 0, %s110
      %s114 = sphi 0, %s113
      %s130 = sphi 0, %s114
    $region4: #{tpu_custom_call.1} parent=1 // loop_header_branch
      %14 = sbr.rel (%p12) target = $region8
    $region5: #{tpu_custom_call.1} parent=1 // loop_body
      %s16 = ssub.s32 %s11, 1
      %s17 = ssub.s32 %s11, 2
      %s18 = sadd.s32 %s11, 1
      %s19 = ssub.s32 %s11, %s18
      %p20 = scmp.eq.s32.totalorder %s19, 0
      %s22 = sadd.s32 %s21, 1
      %s23 = scalar_select %p20, %s21, %s22
      %p26 = pneg %p20
      %p27 = scmp.eq.s32.totalorder %s11, 1
      %p28 = por %p26, %p27
      %p29 = scmp.ne.s32.totalorder %s21, %s24
      %p30 = scmp.eq.s32.totalorder %s11, 0
      %p31 = por %p29, %p30
      %p32 = scmp.ne.s32.totalorder %s21, %s24
      %p33 = scmp.eq.s32.totalorder %s16, 1
      %p34 = por %p32, %p33
      %p35 = scmp.ne.s32.totalorder %s24, %s25
      %p36 = scmp.eq.s32.totalorder %s16, 0
      %p37 = por %p35, %p36
      %p38 = scmp.ne.s32.totalorder %s24, %s25
      %p39 = scmp.eq.s32.totalorder %s17, 1
      %p40 = por %p38, %p39
      %p42 = scmp.ne.s32.totalorder %s25, %s41
      %p43 = scmp.eq.s32.totalorder %s17, 0
      %p44 = por %p42, %p43
      %s46 = sadd.s32 %s45, 1
      %p49 = scmp.eq.s32.totalorder %s11, 1
      %p50 = scmp.ne.s32.totalorder %s45, %s47
      %p51 = scmp.eq.s32.totalorder %s11, 0
      %p52 = por %p50, %p51
      %p53 = scmp.ne.s32.totalorder %s45, %s47
      %p54 = scmp.eq.s32.totalorder %s16, 1
      %p55 = por %p53, %p54
      %p56 = scmp.ne.s32.totalorder %s47, %s48
      %p57 = scmp.eq.s32.totalorder %s16, 0
      %p58 = por %p56, %p57
      %p59 = scmp.ne.s32.totalorder %s47, %s48
      %p60 = scmp.eq.s32.totalorder %s17, 1
      %p61 = por %p59, %p60
      %p63 = scmp.ne.s32.totalorder %s48, %s62
      %p64 = scmp.eq.s32.totalorder %s17, 0
      %p65 = por %p63, %p64
      %s67 = sadd.s32 %s66, 1
      %p70 = scmp.eq.s32.totalorder %s11, 1
      %p71 = scmp.ne.s32.totalorder %s66, %s68
      %p72 = scmp.eq.s32.totalorder %s11, 0
      %p73 = por %p71, %p72
      %p74 = scmp.ne.s32.totalorder %s66, %s68
      %p75 = scmp.eq.s32.totalorder %s16, 1
      %p76 = por %p74, %p75
      %p77 = scmp.ne.s32.totalorder %s68, %s69
      %p78 = scmp.eq.s32.totalorder %s16, 0
      %p79 = por %p77, %p78
      %p80 = scmp.ne.s32.totalorder %s68, %s69
      %p81 = scmp.eq.s32.totalorder %s17, 1
      %p82 = por %p80, %p81
      %p84 = scmp.ne.s32.totalorder %s69, %s83
      %p85 = scmp.eq.s32.totalorder %s17, 0
      %p86 = por %p84, %p85
      %s88 = sadd.s32 %s87, 1
      %p91 = scmp.eq.s32.totalorder %s11, 1
      %p92 = scmp.ne.s32.totalorder %s87, %s89
      %p93 = scmp.eq.s32.totalorder %s11, 0
      %p94 = por %p92, %p93
      %p95 = scmp.ne.s32.totalorder %s87, %s89
      %p96 = scmp.eq.s32.totalorder %s16, 1
      %p97 = por %p95, %p96
      %p98 = scmp.ne.s32.totalorder %s89, %s90
      %p99 = scmp.eq.s32.totalorder %s16, 0
      %p100 = por %p98, %p99
      %p101 = scmp.ne.s32.totalorder %s89, %s90
      %p102 = scmp.eq.s32.totalorder %s17, 1
      %p103 = por %p101, %p102
      %p105 = scmp.ne.s32.totalorder %s90, %s104
      %p106 = scmp.eq.s32.totalorder %s17, 0
      %p107 = por %p105, %p106
      %s108 = ssub.s32 %s11, %s18
      %p109 = scmp.eq.s32.totalorder %s108, 0
      %s111 = sadd.s32 %s110, 1
      %s112 = scalar_select %p109, %s110, %s111
      %p115 = pneg %p109
      %p116 = scmp.eq.s32.totalorder %s11, 1
      %p117 = por %p115, %p116
      %p118 = scmp.ne.s32.totalorder %s110, %s113
      %p119 = scmp.eq.s32.totalorder %s11, 0
      %p120 = por %p118, %p119
      %p121 = scmp.ne.s32.totalorder %s110, %s113
      %p122 = scmp.eq.s32.totalorder %s16, 1
      %p123 = por %p121, %p122
      %p124 = scmp.ne.s32.totalorder %s113, %s114
      %p125 = scmp.eq.s32.totalorder %s16, 0
      %p126 = por %p124, %p125
      %p127 = scmp.ne.s32.totalorder %s113, %s114
      %p128 = scmp.eq.s32.totalorder %s17, 1
      %p129 = por %p127, %p128
      %p131 = scmp.ne.s32.totalorder %s114, %s130
      %p132 = scmp.eq.s32.totalorder %s17, 0
      %p133 = por %p131, %p132
      %p134 = scmp.le.s32.totalorder 1, %s11
      %p135 = scmp.lt.s32.totalorder %s11, 3
      %p136 = pnand %p134, %p135
      %p137 = pneg %p136
      // Predicated region
      $region9: #{tpu_custom_call.1} parent=5 // pred_check
        _
      $region10: #{tpu_custom_call.1} parent=5 // pred_check_branch
        %139 = sbr.rel (%p136) target = $region12
      $region11: #{tpu_custom_call.1} parent=5 // pred_region
        %s140 = ssub.s32 %s11, 1
        // Predicated region
        $region13: #{tpu_custom_call.1} parent=11 // pred_check
          %p141 = pneg %p58
        $region14: #{tpu_custom_call.1} parent=11 // pred_check_branch
          %143 = sbr.rel (%p141) target = $region16
        $region15: #{tpu_custom_call.1} parent=11 // pred_region
          %145 = vsyncadd [#allocation5], 0
          %s146 = sshll.u32 %s1, 4
          %s147 = int_to_ptr.hbm [resolvable:$true] %s146
          %s148 = sshll.u32 [#allocation4], 4
          %s149 = int_to_ptr.vmem [resolvable:$true] %s148
          %154 = dma.hbm_to_vmem [thread:$0]  %s147, 1536, %s149, [#allocation5], 128, 128, 8
        $region16: #{tpu_custom_call.1} parent=11 // pred_fallthru
          _
        // Predicated region
        $region17: #{tpu_custom_call.1} parent=11 // pred_check
          %p155 = pneg %p79
        $region18: #{tpu_custom_call.1} parent=11 // pred_check_branch
          %157 = sbr.rel (%p155) target = $region20
        $region19: #{tpu_custom_call.1} parent=11 // pred_region
          _
        $region20: #{tpu_custom_call.1} parent=11 // pred_fallthru
          _
        // Predicated region
        $region21: #{tpu_custom_call.1} parent=11 // pred_check
          %p158 = pneg %p100
        $region22: #{tpu_custom_call.1} parent=11 // pred_check_branch
          %160 = sbr.rel (%p158) target = $region24
        $region23: #{tpu_custom_call.1} parent=11 // pred_region
          _
        $region24: #{tpu_custom_call.1} parent=11 // pred_fallthru
          _
      $region12: #{tpu_custom_call.1} parent=5 // pred_fallthru
        _
      %p161 = scmp.lt.s32.totalorder %s11, 2
      // Predicated region
      $region25: #{tpu_custom_call.1} parent=5 // pred_check
        %p162 = pneg %p161
      $region26: #{tpu_custom_call.1} parent=5 // pred_check_branch
        %164 = sbr.rel (%p162) target = $region28
      $region27: #{tpu_custom_call.1} parent=5 // pred_region
        // Predicated region
        $region29: #{tpu_custom_call.1} parent=27 // pred_check
          %p165 = pneg %p31
        $region30: #{tpu_custom_call.1} parent=27 // pred_check_branch
          %167 = sbr.rel (%p165) target = $region32
        $region31: #{tpu_custom_call.1} parent=27 // pred_region
          %s168 = sand.u32 %s21, 1
          %s169 = sand.u32 %s21, 1
          %s170 = smul.addr %s169, 64
          %s171 = scalar_lea.vmem [#allocation3], %s170
          %s172 = smul.u32 2, %s11
          %s173 = smul.addr %s172, 8
          %s174 = scalar_lea.vmem %s0, %s173
          // Predicated region
          $region33: #{tpu_custom_call.1} parent=31 // pred_check
            _
          $region34: #{tpu_custom_call.1} parent=31 // pred_check_branch
            %176 = sbr.rel (0) target = $region36
          $region35: #{tpu_custom_call.1} parent=31 // pred_region
            // Predicated region
            $region37: #{tpu_custom_call.1} parent=35 // pred_check
              _
            $region38: #{tpu_custom_call.1} parent=35 // pred_check_branch
              %178 = sbr.rel (0) target = $region40
            $region39: #{tpu_custom_call.1} parent=35 // pred_region
              loop: start=0, step=1, limit=1
              $region41: #{tpu_custom_call.1} parent=39 // loop_pre_header
                _
              $region42: #{tpu_custom_call.1} parent=39 // loop_header
                %s180 = sphi 0, %s184
                %p181 = scmp.ge.s32.totalorder %s180, 1
                %s185 = sphi %s174, %s174
                %s186 = sphi %s171, %s171
              $region43: #{tpu_custom_call.1} parent=39 // loop_header_branch
                %183 = sbr.rel (%p181) target = $region47
              $region44: #{tpu_custom_call.1} parent=39 // loop_body
                %v187 = vld [vmem:[%s185] sm:$0xff]
                %188 = vst [vmem:[%s186] sm:$0xff] %v187
                %v189 = vld [vmem:[%s185 + $0x8] sm:$0xff]
                %190 = vst [vmem:[%s186 + $0x8] sm:$0xff] %v189
                %v191 = vld [vmem:[%s185 + $0x20] sm:$0xff]
                %192 = vst [vmem:[%s186 + $0x10] sm:$0xff] %v191
                %v193 = vld [vmem:[%s185 + $0x28] sm:$0xff]
                %194 = vst [vmem:[%s186 + $0x18] sm:$0xff] %v193
                %v195 = vld [vmem:[%s185 + $0x40] sm:$0xff]
                %196 = vst [vmem:[%s186 + $0x20] sm:$0xff] %v195
                %v197 = vld [vmem:[%s185 + $0x48] sm:$0xff]
                %198 = vst [vmem:[%s186 + $0x28] sm:$0xff] %v197
                %v199 = vld [vmem:[%s185 + $0x60] sm:$0xff]
                %200 = vst [vmem:[%s186 + $0x30] sm:$0xff] %v199
                %v201 = vld [vmem:[%s185 + $0x68] sm:$0xff]
                %202 = vst [vmem:[%s186 + $0x38] sm:$0xff] %v201
              $region45: #{tpu_custom_call.1} parent=39 // loop_footer
                %s184 = sadd.s32 1, %s180
              $region46: #{tpu_custom_call.1} parent=39 // loop_footer_branch
                %179 = sbr.rel target = $region42
              $region47: #{tpu_custom_call.1} parent=39 // loop_exit
                _
            $region40: #{tpu_custom_call.1} parent=35 // pred_fallthru
              _
            // Predicated region
            $region48: #{tpu_custom_call.1} parent=35 // pred_check
              _
            $region49: #{tpu_custom_call.1} parent=35 // pred_check_branch
              %204 = sbr.rel target = $region51
            $region50: #{tpu_custom_call.1} parent=35 // pred_region
              _
            $region51: #{tpu_custom_call.1} parent=35 // pred_fallthru
              _
          $region36: #{tpu_custom_call.1} parent=31 // pred_fallthru
            _
          %205 = vnop
        $region32: #{tpu_custom_call.1} parent=27 // pred_fallthru
          _
      $region28: #{tpu_custom_call.1} parent=5 // pred_fallthru
        _
      %p206 = scmp.le.s32.totalorder 1, %s11
      %p207 = scmp.lt.s32.totalorder %s11, 3
      %p208 = pnand %p206, %p207
      %p209 = pneg %p208
      // Predicated region
      $region52: #{tpu_custom_call.1} parent=5 // pred_check
        _
      $region53: #{tpu_custom_call.1} parent=5 // pred_check_branch
        %211 = sbr.rel (%p208) target = $region55
      $region54: #{tpu_custom_call.1} parent=5 // pred_region
        %s212 = ssub.s32 %s11, 1
        %s213 = sand.u32 %s24, 1
        %s214 = sand.u32 %s24, 1
        %s215 = smul.addr %s214, 64
        %s216 = scalar_lea.vmem [#allocation3], %s215
        // Predicated region
        $region56: #{tpu_custom_call.1} parent=54 // pred_check
          %p217 = pneg %p37
        $region57: #{tpu_custom_call.1} parent=54 // pred_check_branch
          %219 = sbr.rel (%p217) target = $region59
        $region58: #{tpu_custom_call.1} parent=54 // pred_region
          _
        $region59: #{tpu_custom_call.1} parent=54 // pred_fallthru
          _
        // Predicated region
        $region60: #{tpu_custom_call.1} parent=54 // pred_check
          %p220 = pneg %p58
        $region61: #{tpu_custom_call.1} parent=54 // pred_check_branch
          %222 = sbr.rel (%p220) target = $region63
        $region62: #{tpu_custom_call.1} parent=54 // pred_region
          %224 = dma.done [#allocation5], 1536
        $region63: #{tpu_custom_call.1} parent=54 // pred_fallthru
          _
        %s225 = sand.u32 %s24, 1
        %s226 = sand.u32 %s24, 1
        %s227 = smul.addr %s226, 64
        %s228 = scalar_lea.vmem [#allocation3], %s227
        %p229 = pneg %p37
        %p230 = pneg %p34
        %p231 = pneg %p58
        %p232 = pneg %p55
        %p233 = pneg %p79
        %p234 = pneg %p76
        %p235 = pneg %p100
        %p236 = pneg %p97
        %p237 = pneg %p126
        %p238 = pneg %p123
        %p239 = scmp.lt.s32.totalorder %s16, 1
        %s240 = scalar_select %p239, %s16, 1
        %s241 = smul.addr %s240, 25
        %s242 = smul.addr %s241, 8
        %s243 = scalar_lea.vmem %s4, %s242
        %s244 = smul.u32 2, %s16
        %p245 = scmp.lt.s32.totalorder %s16, 1
        %s246 = scalar_select %p245, %s16, 1
        %s247 = smul.addr %s246, 25
        %s248 = smul.addr %s247, 8
        %s249 = scalar_lea.vmem %s4, %s248
        %v250 = vld [vmem:[%s216] sm:$0xff]
        %v251 = vld [vmem:[%s216 + $0x8] sm:$0xff]
        %v252 = vld [vmem:[%s216 + $0x10] sm:$0xff]
        %v253 = vld [vmem:[%s216 + $0x18] sm:$0xff]
        %v254 = vld [vmem:[%s216 + $0x20] sm:$0xff]
        %v255 = vld [vmem:[%s216 + $0x28] sm:$0xff]
        %v256 = vld [vmem:[%s216 + $0x30] sm:$0x1]
        %v257 = vld [vmem:[%s216 + $0x38] sm:$0x1]
        %v258 = vld [vmem:[#allocation4] sm:$0xff]
        %v259 = vld [vmem:[#allocation4 + $0x8] sm:$0xff]
        %v260 = vld [vmem:[#allocation4 + $0x10] sm:$0xff]
        %v261 = vld [vmem:[#allocation4 + $0x18] sm:$0x1]
        %v262 = vld [vmem:[#allocation4 + $0x20] sm:$0xff]
        %v263 = vld [vmem:[#allocation4 + $0x28] sm:$0xff]
        %v264 = vld [vmem:[#allocation4 + $0x30] sm:$0xff]
        %v265 = vld [vmem:[#allocation4 + $0x38] sm:$0x1]
        %v266 = vld [vmem:[#allocation4 + $0x40] sm:$0xff]
        %v267 = vld [vmem:[#allocation4 + $0x48] sm:$0xff]
        %v268 = vld [vmem:[#allocation4 + $0x50] sm:$0xff]
        %v269 = vld [vmem:[#allocation4 + $0x58] sm:$0x1]
        %vm270 = vcmask 203776
        %v272 = vsel %vm270, %v258, 0
        %v275 = vsel %vm270, %v259, 0
        %v278 = vsel %vm270, %v260, 0
        %v281 = vsel %vm270, %v261, 0
        %vm283 = vcmask 1040384
        %v285 = vsel %vm283, %v256, 0
        %v288 = vsel %vm283, %v257, 0
        %290 = vmatpush.msra.mxu0 0.0
        %291 = vmatpush.msra.mxu0 0.0
        %292 = vmatpush.msra.mxu0 0.0
        %293 = vmatpush.msra.mxu0 0.0
        %294 = vmatpush.msra.mxu0 0.0
        %295 = vmatpush.msra.mxu0 0.0
        %296 = vmatpush.msra.mxu0 0.0
        %297 = vmatpush.msra.mxu0 0.0
        %298 = vmatpush.msra.mxu0 0.0
        %299 = vmatpush.msra.mxu0 0.0
        %300 = vmatpush.msra.mxu0 0.0
        %301 = vmatpush.msra.mxu0 0.0
        %302 = vmatpush.msra.mxu0 %v285
        %303 = vmatpush.msra.mxu0 %v254
        %304 = vmatpush.msra.mxu0 %v252
        %305 = vmatpush.msra.mxu0 %v250
        %306 = vmatmul.f32.gmra.mxu0 %v272
        %v307 = vpop.f32.mrf.mxu0
        %v308 = vadd.f32 0.0, %v307
        %309 = vmatmul.f32.gmra.mxu0 %v275
        %v310 = vpop.f32.mrf.mxu0
        %v311 = vadd.f32 0.0, %v310
        %312 = vmatmul.f32.gmra.mxu0 %v278
        %v313 = vpop.f32.mrf.mxu0
        %v314 = vadd.f32 0.0, %v313
        %315 = vmatmul.f32.gmra.mxu0 %v281
        %v316 = vpop.f32.mrf.mxu0
        %v317 = vadd.f32 0.0, %v316
        %318 = vdwg.mxu0
        %319 = vmatpush.msra.mxu0 0.0
        %320 = vmatpush.msra.mxu0 0.0
        %321 = vmatpush.msra.mxu0 0.0
        %322 = vmatpush.msra.mxu0 0.0
        %323 = vmatpush.msra.mxu0 0.0
        %324 = vmatpush.msra.mxu0 0.0
        %325 = vmatpush.msra.mxu0 0.0
        %326 = vmatpush.msra.mxu0 0.0
        %327 = vmatpush.msra.mxu0 0.0
        %328 = vmatpush.msra.mxu0 0.0
        %329 = vmatpush.msra.mxu0 0.0
        %330 = vmatpush.msra.mxu0 0.0
        %331 = vmatpush.msra.mxu0 %v288
        %332 = vmatpush.msra.mxu0 %v255
        %333 = vmatpush.msra.mxu0 %v253
        %334 = vmatpush.msra.mxu0 %v251
        %335 = vmatmul.f32.gmra.mxu0 %v272
        %v336 = vpop.f32.mrf.mxu0
        %v337 = vadd.f32 0.0, %v336
        %338 = vmatmul.f32.gmra.mxu0 %v275
        %v339 = vpop.f32.mrf.mxu0
        %v340 = vadd.f32 0.0, %v339
        %341 = vmatmul.f32.gmra.mxu0 %v278
        %v342 = vpop.f32.mrf.mxu0
        %v343 = vadd.f32 0.0, %v342
        %344 = vmatmul.f32.gmra.mxu0 %v281
        %v345 = vpop.f32.mrf.mxu0
        %v346 = vadd.f32 0.0, %v345
        %347 = vdwg.mxu0
        %v349 = vsel %vm270, %v262, 0
        %v352 = vsel %vm270, %v263, 0
        %v355 = vsel %vm270, %v264, 0
        %v358 = vsel %vm270, %v265, 0
        %360 = vmatpush.msra.mxu0 0.0
        %361 = vmatpush.msra.mxu0 0.0
        %362 = vmatpush.msra.mxu0 0.0
        %363 = vmatpush.msra.mxu0 0.0
        %364 = vmatpush.msra.mxu0 0.0
        %365 = vmatpush.msra.mxu0 0.0
        %366 = vmatpush.msra.mxu0 0.0
        %367 = vmatpush.msra.mxu0 0.0
        %368 = vmatpush.msra.mxu0 0.0
        %369 = vmatpush.msra.mxu0 0.0
        %370 = vmatpush.msra.mxu0 0.0
        %371 = vmatpush.msra.mxu0 0.0
        %372 = vmatpush.msra.mxu0 %v285
        %373 = vmatpush.msra.mxu0 %v254
        %374 = vmatpush.msra.mxu0 %v252
        %375 = vmatpush.msra.mxu0 %v250
        %376 = vmatmul.f32.gmra.mxu0 %v349
        %v377 = vpop.f32.mrf.mxu0
        %v378 = vadd.f32 0.0, %v377
        %379 = vmatmul.f32.gmra.mxu0 %v352
        %v380 = vpop.f32.mrf.mxu0
        %v381 = vadd.f32 0.0, %v380
        %382 = vmatmul.f32.gmra.mxu0 %v355
        %v383 = vpop.f32.mrf.mxu0
        %v384 = vadd.f32 0.0, %v383
        %385 = vmatmul.f32.gmra.mxu0 %v358
        %v386 = vpop.f32.mrf.mxu0
        %v387 = vadd.f32 0.0, %v386
        %388 = vdwg.mxu0
        %389 = vmatpush.msra.mxu0 0.0
        %390 = vmatpush.msra.mxu0 0.0
        %391 = vmatpush.msra.mxu0 0.0
        %392 = vmatpush.msra.mxu0 0.0
        %393 = vmatpush.msra.mxu0 0.0
        %394 = vmatpush.msra.mxu0 0.0
        %395 = vmatpush.msra.mxu0 0.0
        %396 = vmatpush.msra.mxu0 0.0
        %397 = vmatpush.msra.mxu0 0.0
        %398 = vmatpush.msra.mxu0 0.0
        %399 = vmatpush.msra.mxu0 0.0
        %400 = vmatpush.msra.mxu0 0.0
        %401 = vmatpush.msra.mxu0 %v288
        %402 = vmatpush.msra.mxu0 %v255
        %403 = vmatpush.msra.mxu0 %v253
        %404 = vmatpush.msra.mxu0 %v251
        %405 = vmatmul.f32.gmra.mxu0 %v349
        %v406 = vpop.f32.mrf.mxu0
        %v407 = vadd.f32 0.0, %v406
        %408 = vmatmul.f32.gmra.mxu0 %v352
        %v409 = vpop.f32.mrf.mxu0
        %v410 = vadd.f32 0.0, %v409
        %411 = vmatmul.f32.gmra.mxu0 %v355
        %v412 = vpop.f32.mrf.mxu0
        %v413 = vadd.f32 0.0, %v412
        %414 = vmatmul.f32.gmra.mxu0 %v358
        %v415 = vpop.f32.mrf.mxu0
        %v416 = vadd.f32 0.0, %v415
        %417 = vdwg.mxu0
        %v419 = vsel %vm270, %v266, 0
        %v422 = vsel %vm270, %v267, 0
        %v425 = vsel %vm270, %v268, 0
        %v428 = vsel %vm270, %v269, 0
        %430 = vmatpush.msra.mxu0 0.0
        %431 = vmatpush.msra.mxu0 0.0
        %432 = vmatpush.msra.mxu0 0.0
        %433 = vmatpush.msra.mxu0 0.0
        %434 = vmatpush.msra.mxu0 0.0
        %435 = vmatpush.msra.mxu0 0.0
        %436 = vmatpush.msra.mxu0 0.0
        %437 = vmatpush.msra.mxu0 0.0
        %438 = vmatpush.msra.mxu0 0.0
        %439 = vmatpush.msra.mxu0 0.0
        %440 = vmatpush.msra.mxu0 0.0
        %441 = vmatpush.msra.mxu0 0.0
        %442 = vmatpush.msra.mxu0 %v285
        %443 = vmatpush.msra.mxu0 %v254
        %444 = vmatpush.msra.mxu0 %v252
        %445 = vmatpush.msra.mxu0 %v250
        %446 = vmatmul.f32.gmra.mxu0 %v419
        %v447 = vpop.f32.mrf.mxu0
        %v448 = vadd.f32 0.0, %v447
        %449 = vmatmul.f32.gmra.mxu0 %v422
        %v450 = vpop.f32.mrf.mxu0
        %v451 = vadd.f32 0.0, %v450
        %452 = vmatmul.f32.gmra.mxu0 %v425
        %v453 = vpop.f32.mrf.mxu0
        %v454 = vadd.f32 0.0, %v453
        %455 = vmatmul.f32.gmra.mxu0 %v428
        %v456 = vpop.f32.mrf.mxu0
        %v457 = vadd.f32 0.0, %v456
        %458 = vdwg.mxu0
        %459 = vmatpush.msra.mxu0 0.0
        %460 = vmatpush.msra.mxu0 0.0
        %461 = vmatpush.msra.mxu0 0.0
        %462 = vmatpush.msra.mxu0 0.0
        %463 = vmatpush.msra.mxu0 0.0
        %464 = vmatpush.msra.mxu0 0.0
        %465 = vmatpush.msra.mxu0 0.0
        %466 = vmatpush.msra.mxu0 0.0
        %467 = vmatpush.msra.mxu0 0.0
        %468 = vmatpush.msra.mxu0 0.0
        %469 = vmatpush.msra.mxu0 0.0
        %470 = vmatpush.msra.mxu0 0.0
        %471 = vmatpush.msra.mxu0 %v288
        %472 = vmatpush.msra.mxu0 %v255
        %473 = vmatpush.msra.mxu0 %v253
        %474 = vmatpush.msra.mxu0 %v251
        %475 = vmatmul.f32.gmra.mxu0 %v419
        %v476 = vpop.f32.mrf.mxu0
        %v477 = vadd.f32 0.0, %v476
        %478 = vmatmul.f32.gmra.mxu0 %v422
        %v479 = vpop.f32.mrf.mxu0
        %v480 = vadd.f32 0.0, %v479
        %481 = vmatmul.f32.gmra.mxu0 %v425
        %v482 = vpop.f32.mrf.mxu0
        %v483 = vadd.f32 0.0, %v482
        %484 = vmatmul.f32.gmra.mxu0 %v428
        %v485 = vpop.f32.mrf.mxu0
        %v486 = vadd.f32 0.0, %v485
        %487 = vdwg.mxu0
        %vm488 = vcmask 261120
        %489 = vst.msk [vmem:[#allocation2] sm:$0xff] %vm488, %v308
        %490 = vst.msk [vmem:[#allocation2 + $0x8] sm:$0xff] %vm488, %v311
        %491 = vst.msk [vmem:[#allocation2 + $0x10] sm:$0xff] %vm488, %v314
        %vm492 = vcmask 253952
        %493 = vst.msk [vmem:[#allocation2 + $0x18] sm:$0x1] %vm492, %v317
        %498 = vrot.lane.b32.xlu0 %v308, 96
        %v499 = vpop.permute.xlu0 %498
        %500 = vrot.lane.b32.xlu0 %v311, 96
        %v501 = vpop.permute.xlu0 %500
        %502 = vrot.lane.b32.xlu0 %v314, 96
        %v503 = vpop.permute.xlu0 %502
        %504 = vrot.lane.b32.xlu0 %v317, 96
        %v505 = vpop.permute.xlu0 %504
        %510 = vst.msk [vmem:[#allocation2 + $0x19] sm:$0xff] %vm488, %v499
        %511 = vst.msk [vmem:[#allocation2 + $0x21] sm:$0xff] %vm488, %v501
        %512 = vst.msk [vmem:[#allocation2 + $0x29] sm:$0xff] %vm488, %v503
        %513 = vst.msk [vmem:[#allocation2 + $0x31] sm:$0x1] %vm492, %v505
        %514 = vrot.lane.b32.xlu0 %v308, 64
        %v515 = vpop.permute.xlu0 %514
        %516 = vrot.lane.b32.xlu0 %v311, 64
        %v517 = vpop.permute.xlu0 %516
        %518 = vrot.lane.b32.xlu0 %v314, 64
        %v519 = vpop.permute.xlu0 %518
        %520 = vrot.lane.b32.xlu0 %v317, 64
        %v521 = vpop.permute.xlu0 %520
        %526 = vst.msk [vmem:[#allocation2 + $0x32] sm:$0xff] %vm488, %v515
        %527 = vst.msk [vmem:[#allocation2 + $0x3a] sm:$0xff] %vm488, %v517
        %528 = vst.msk [vmem:[#allocation2 + $0x42] sm:$0xff] %vm488, %v519
        %529 = vst.msk [vmem:[#allocation2 + $0x4a] sm:$0x1] %vm492, %v521
        %530 = vrot.lane.b32.xlu0 %v308, 32
        %v531 = vpop.permute.xlu0 %530
        %532 = vrot.lane.b32.xlu0 %v311, 32
        %v533 = vpop.permute.xlu0 %532
        %534 = vrot.lane.b32.xlu0 %v314, 32
        %v535 = vpop.permute.xlu0 %534
        %536 = vrot.lane.b32.xlu0 %v317, 32
        %v537 = vpop.permute.xlu0 %536
        %542 = vst.msk [vmem:[#allocation2 + $0x4b] sm:$0xff] %vm488, %v531
        %543 = vst.msk [vmem:[#allocation2 + $0x53] sm:$0xff] %vm488, %v533
        %544 = vst.msk [vmem:[#allocation2 + $0x5b] sm:$0xff] %vm488, %v535
        %545 = vst.msk [vmem:[#allocation2 + $0x63] sm:$0x1] %vm492, %v537
        %546 = vst.msk [vmem:[#allocation2 + $0x64] sm:$0xff] %vm488, %v337
        %547 = vst.msk [vmem:[#allocation2 + $0x6c] sm:$0xff] %vm488, %v340
        %548 = vst.msk [vmem:[#allocation2 + $0x74] sm:$0xff] %vm488, %v343
        %549 = vst.msk [vmem:[#allocation2 + $0x7c] sm:$0x1] %vm492, %v346
        %554 = vrot.lane.b32.xlu0 %v337, 96
        %v555 = vpop.permute.xlu0 %554
        %556 = vrot.lane.b32.xlu0 %v340, 96
        %v557 = vpop.permute.xlu0 %556
        %558 = vrot.lane.b32.xlu0 %v343, 96
        %v559 = vpop.permute.xlu0 %558
        %560 = vrot.lane.b32.xlu0 %v346, 96
        %v561 = vpop.permute.xlu0 %560
        %566 = vst.msk [vmem:[#allocation2 + $0x7d] sm:$0xff] %vm488, %v555
        %567 = vst.msk [vmem:[#allocation2 + $0x85] sm:$0xff] %vm488, %v557
        %568 = vst.msk [vmem:[#allocation2 + $0x8d] sm:$0xff] %vm488, %v559
        %569 = vst.msk [vmem:[#allocation2 + $0x95] sm:$0x1] %vm492, %v561
        %570 = vrot.lane.b32.xlu0 %v337, 64
        %v571 = vpop.permute.xlu0 %570
        %572 = vrot.lane.b32.xlu0 %v340, 64
        %v573 = vpop.permute.xlu0 %572
        %574 = vrot.lane.b32.xlu0 %v343, 64
        %v575 = vpop.permute.xlu0 %574
        %576 = vrot.lane.b32.xlu0 %v346, 64
        %v577 = vpop.permute.xlu0 %576
        %582 = vst.msk [vmem:[#allocation2 + $0x96] sm:$0xff] %vm488, %v571
        %583 = vst.msk [vmem:[#allocation2 + $0x9e] sm:$0xff] %vm488, %v573
        %584 = vst.msk [vmem:[#allocation2 + $0xa6] sm:$0xff] %vm488, %v575
        %585 = vst.msk [vmem:[#allocation2 + $0xae] sm:$0x1] %vm492, %v577
        %586 = vrot.lane.b32.xlu0 %v337, 32
        %v587 = vpop.permute.xlu0 %586
        %588 = vrot.lane.b32.xlu0 %v340, 32
        %v589 = vpop.permute.xlu0 %588
        %590 = vrot.lane.b32.xlu0 %v343, 32
        %v591 = vpop.permute.xlu0 %590
        %592 = vrot.lane.b32.xlu0 %v346, 32
        %v593 = vpop.permute.xlu0 %592
        %598 = vst.msk [vmem:[#allocation2 + $0xaf] sm:$0xff] %vm488, %v587
        %599 = vst.msk [vmem:[#allocation2 + $0xb7] sm:$0xff] %vm488, %v589
        %600 = vst.msk [vmem:[#allocation2 + $0xbf] sm:$0xff] %vm488, %v591
        %601 = vst.msk [vmem:[#allocation2 + $0xc7] sm:$0x1] %vm492, %v593
        %606 = vrot.lane.b32.xlu0 %v378, 32
        %v607 = vpop.permute.xlu0 %606
        %608 = vrot.lane.b32.xlu0 %v381, 32
        %v609 = vpop.permute.xlu0 %608
        %610 = vrot.lane.b32.xlu0 %v384, 32
        %v611 = vpop.permute.xlu0 %610
        %612 = vrot.lane.b32.xlu0 %v387, 32
        %v613 = vpop.permute.xlu0 %612
        %vm618 = vcmask 523520
        %619 = vst.msk [vmem:[#allocation2] sm:$0xff] %vm618, %v607
        %620 = vst.msk [vmem:[#allocation2 + $0x8] sm:$0xff] %vm618, %v609
        %621 = vst.msk [vmem:[#allocation2 + $0x10] sm:$0xff] %vm618, %v611
        %vm622 = vcmask 516352
        %623 = vst.msk [vmem:[#allocation2 + $0x18] sm:$0x1] %vm622, %v613
        %624 = vst.msk [vmem:[#allocation2 + $0x19] sm:$0xff] %vm618, %v378
        %625 = vst.msk [vmem:[#allocation2 + $0x21] sm:$0xff] %vm618, %v381
        %626 = vst.msk [vmem:[#allocation2 + $0x29] sm:$0xff] %vm618, %v384
        %627 = vst.msk [vmem:[#allocation2 + $0x31] sm:$0x1] %vm622, %v387
        %628 = vrot.lane.b32.xlu0 %v378, 96
        %v629 = vpop.permute.xlu0 %628
        %630 = vrot.lane.b32.xlu0 %v381, 96
        %v631 = vpop.permute.xlu0 %630
        %632 = vrot.lane.b32.xlu0 %v384, 96
        %v633 = vpop.permute.xlu0 %632
        %634 = vrot.lane.b32.xlu0 %v387, 96
        %v635 = vpop.permute.xlu0 %634
        %640 = vst.msk [vmem:[#allocation2 + $0x32] sm:$0xff] %vm618, %v629
        %641 = vst.msk [vmem:[#allocation2 + $0x3a] sm:$0xff] %vm618, %v631
        %642 = vst.msk [vmem:[#allocation2 + $0x42] sm:$0xff] %vm618, %v633
        %643 = vst.msk [vmem:[#allocation2 + $0x4a] sm:$0x1] %vm622, %v635
        %644 = vrot.lane.b32.xlu0 %v378, 64
        %v645 = vpop.permute.xlu0 %644
        %646 = vrot.lane.b32.xlu0 %v381, 64
        %v647 = vpop.permute.xlu0 %646
        %648 = vrot.lane.b32.xlu0 %v384, 64
        %v649 = vpop.permute.xlu0 %648
        %650 = vrot.lane.b32.xlu0 %v387, 64
        %v651 = vpop.permute.xlu0 %650
        %656 = vst.msk [vmem:[#allocation2 + $0x4b] sm:$0xff] %vm618, %v645
        %657 = vst.msk [vmem:[#allocation2 + $0x53] sm:$0xff] %vm618, %v647
        %658 = vst.msk [vmem:[#allocation2 + $0x5b] sm:$0xff] %vm618, %v649
        %659 = vst.msk [vmem:[#allocation2 + $0x63] sm:$0x1] %vm622, %v651
        %664 = vrot.lane.b32.xlu0 %v407, 32
        %v665 = vpop.permute.xlu0 %664
        %666 = vrot.lane.b32.xlu0 %v410, 32
        %v667 = vpop.permute.xlu0 %666
        %668 = vrot.lane.b32.xlu0 %v413, 32
        %v669 = vpop.permute.xlu0 %668
        %670 = vrot.lane.b32.xlu0 %v416, 32
        %v671 = vpop.permute.xlu0 %670
        %676 = vst.msk [vmem:[#allocation2 + $0x64] sm:$0xff] %vm618, %v665
        %677 = vst.msk [vmem:[#allocation2 + $0x6c] sm:$0xff] %vm618, %v667
        %678 = vst.msk [vmem:[#allocation2 + $0x74] sm:$0xff] %vm618, %v669
        %679 = vst.msk [vmem:[#allocation2 + $0x7c] sm:$0x1] %vm622, %v671
        %680 = vst.msk [vmem:[#allocation2 + $0x7d] sm:$0xff] %vm618, %v407
        %681 = vst.msk [vmem:[#allocation2 + $0x85] sm:$0xff] %vm618, %v410
        %682 = vst.msk [vmem:[#allocation2 + $0x8d] sm:$0xff] %vm618, %v413
        %683 = vst.msk [vmem:[#allocation2 + $0x95] sm:$0x1] %vm622, %v416
        %684 = vrot.lane.b32.xlu0 %v407, 96
        %v685 = vpop.permute.xlu0 %684
        %686 = vrot.lane.b32.xlu0 %v410, 96
        %v687 = vpop.permute.xlu0 %686
        %688 = vrot.lane.b32.xlu0 %v413, 96
        %v689 = vpop.permute.xlu0 %688
        %690 = vrot.lane.b32.xlu0 %v416, 96
        %v691 = vpop.permute.xlu0 %690
        %696 = vst.msk [vmem:[#allocation2 + $0x96] sm:$0xff] %vm618, %v685
        %697 = vst.msk [vmem:[#allocation2 + $0x9e] sm:$0xff] %vm618, %v687
        %698 = vst.msk [vmem:[#allocation2 + $0xa6] sm:$0xff] %vm618, %v689
        %699 = vst.msk [vmem:[#allocation2 + $0xae] sm:$0x1] %vm622, %v691
        %700 = vrot.lane.b32.xlu0 %v407, 64
        %v701 = vpop.permute.xlu0 %700
        %702 = vrot.lane.b32.xlu0 %v410, 64
        %v703 = vpop.permute.xlu0 %702
        %704 = vrot.lane.b32.xlu0 %v413, 64
        %v705 = vpop.permute.xlu0 %704
        %706 = vrot.lane.b32.xlu0 %v416, 64
        %v707 = vpop.permute.xlu0 %706
        %712 = vst.msk [vmem:[#allocation2 + $0xaf] sm:$0xff] %vm618, %v701
        %713 = vst.msk [vmem:[#allocation2 + $0xb7] sm:$0xff] %vm618, %v703
        %714 = vst.msk [vmem:[#allocation2 + $0xbf] sm:$0xff] %vm618, %v705
        %715 = vst.msk [vmem:[#allocation2 + $0xc7] sm:$0x1] %vm622, %v707
        %720 = vrot.lane.b32.xlu0 %v448, 64
        %v721 = vpop.permute.xlu0 %720
        %722 = vrot.lane.b32.xlu0 %v451, 64
        %v723 = vpop.permute.xlu0 %722
        %724 = vrot.lane.b32.xlu0 %v454, 64
        %v725 = vpop.permute.xlu0 %724
        %726 = vrot.lane.b32.xlu0 %v457, 64
        %v727 = vpop.permute.xlu0 %726
        %vm732 = vcmask 785920
        %733 = vst.msk [vmem:[#allocation2] sm:$0xff] %vm732, %v721
        %734 = vst.msk [vmem:[#allocation2 + $0x8] sm:$0xff] %vm732, %v723
        %735 = vst.msk [vmem:[#allocation2 + $0x10] sm:$0xff] %vm732, %v725
        %vm736 = vcmask 778752
        %737 = vst.msk [vmem:[#allocation2 + $0x18] sm:$0x1] %vm736, %v727
        %738 = vrot.lane.b32.xlu0 %v448, 32
        %v739 = vpop.permute.xlu0 %738
        %740 = vrot.lane.b32.xlu0 %v451, 32
        %v741 = vpop.permute.xlu0 %740
        %742 = vrot.lane.b32.xlu0 %v454, 32
        %v743 = vpop.permute.xlu0 %742
        %744 = vrot.lane.b32.xlu0 %v457, 32
        %v745 = vpop.permute.xlu0 %744
        %750 = vst.msk [vmem:[#allocation2 + $0x19] sm:$0xff] %vm732, %v739
        %751 = vst.msk [vmem:[#allocation2 + $0x21] sm:$0xff] %vm732, %v741
        %752 = vst.msk [vmem:[#allocation2 + $0x29] sm:$0xff] %vm732, %v743
        %753 = vst.msk [vmem:[#allocation2 + $0x31] sm:$0x1] %vm736, %v745
        %754 = vst.msk [vmem:[#allocation2 + $0x32] sm:$0xff] %vm732, %v448
        %755 = vst.msk [vmem:[#allocation2 + $0x3a] sm:$0xff] %vm732, %v451
        %756 = vst.msk [vmem:[#allocation2 + $0x42] sm:$0xff] %vm732, %v454
        %757 = vst.msk [vmem:[#allocation2 + $0x4a] sm:$0x1] %vm736, %v457
        %758 = vrot.lane.b32.xlu0 %v448, 96
        %v759 = vpop.permute.xlu0 %758
        %760 = vrot.lane.b32.xlu0 %v451, 96
        %v761 = vpop.permute.xlu0 %760
        %762 = vrot.lane.b32.xlu0 %v454, 96
        %v763 = vpop.permute.xlu0 %762
        %764 = vrot.lane.b32.xlu0 %v457, 96
        %v765 = vpop.permute.xlu0 %764
        %770 = vst.msk [vmem:[#allocation2 + $0x4b] sm:$0xff] %vm732, %v759
        %771 = vst.msk [vmem:[#allocation2 + $0x53] sm:$0xff] %vm732, %v761
        %772 = vst.msk [vmem:[#allocation2 + $0x5b] sm:$0xff] %vm732, %v763
        %773 = vst.msk [vmem:[#allocation2 + $0x63] sm:$0x1] %vm736, %v765
        %778 = vrot.lane.b32.xlu0 %v477, 64
        %v779 = vpop.permute.xlu0 %778
        %780 = vrot.lane.b32.xlu0 %v480, 64
        %v781 = vpop.permute.xlu0 %780
        %782 = vrot.lane.b32.xlu0 %v483, 64
        %v783 = vpop.permute.xlu0 %782
        %784 = vrot.lane.b32.xlu0 %v486, 64
        %v785 = vpop.permute.xlu0 %784
        %790 = vst.msk [vmem:[#allocation2 + $0x64] sm:$0xff] %vm732, %v779
        %791 = vst.msk [vmem:[#allocation2 + $0x6c] sm:$0xff] %vm732, %v781
        %792 = vst.msk [vmem:[#allocation2 + $0x74] sm:$0xff] %vm732, %v783
        %793 = vst.msk [vmem:[#allocation2 + $0x7c] sm:$0x1] %vm736, %v785
        %794 = vrot.lane.b32.xlu0 %v477, 32
        %v795 = vpop.permute.xlu0 %794
        %796 = vrot.lane.b32.xlu0 %v480, 32
        %v797 = vpop.permute.xlu0 %796
        %798 = vrot.lane.b32.xlu0 %v483, 32
        %v799 = vpop.permute.xlu0 %798
        %800 = vrot.lane.b32.xlu0 %v486, 32
        %v801 = vpop.permute.xlu0 %800
        %806 = vst.msk [vmem:[#allocation2 + $0x7d] sm:$0xff] %vm732, %v795
        %807 = vst.msk [vmem:[#allocation2 + $0x85] sm:$0xff] %vm732, %v797
        %808 = vst.msk [vmem:[#allocation2 + $0x8d] sm:$0xff] %vm732, %v799
        %809 = vst.msk [vmem:[#allocation2 + $0x95] sm:$0x1] %vm736, %v801
        %810 = vst.msk [vmem:[#allocation2 + $0x96] sm:$0xff] %vm732, %v477
        %811 = vst.msk [vmem:[#allocation2 + $0x9e] sm:$0xff] %vm732, %v480
        %812 = vst.msk [vmem:[#allocation2 + $0xa6] sm:$0xff] %vm732, %v483
        %813 = vst.msk [vmem:[#allocation2 + $0xae] sm:$0x1] %vm736, %v486
        %814 = vrot.lane.b32.xlu0 %v477, 96
        %v815 = vpop.permute.xlu0 %814
        %816 = vrot.lane.b32.xlu0 %v480, 96
        %v817 = vpop.permute.xlu0 %816
        %818 = vrot.lane.b32.xlu0 %v483, 96
        %v819 = vpop.permute.xlu0 %818
        %820 = vrot.lane.b32.xlu0 %v486, 96
        %v821 = vpop.permute.xlu0 %820
        %826 = vst.msk [vmem:[#allocation2 + $0xaf] sm:$0xff] %vm732, %v815
        %827 = vst.msk [vmem:[#allocation2 + $0xb7] sm:$0xff] %vm732, %v817
        %828 = vst.msk [vmem:[#allocation2 + $0xbf] sm:$0xff] %vm732, %v819
        %829 = vst.msk [vmem:[#allocation2 + $0xc7] sm:$0x1] %vm736, %v821
        %833 = vrot.lane.b32.xlu0 %v250, 96
        %v834 = vpop.permute.xlu0 %833
        %835 = vrot.lane.b32.xlu0 %v252, 96
        %v836 = vpop.permute.xlu0 %835
        %837 = vrot.lane.b32.xlu0 %v254, 96
        %v838 = vpop.permute.xlu0 %837
        %839 = vrot.lane.b32.xlu0 %v256, 96
        %v840 = vpop.permute.xlu0 %839
        %vm845 = vcmask 1048320
        %846 = vst.msk [vmem:[#allocation2] sm:$0xff] %vm845, %v834
        %847 = vst.msk [vmem:[#allocation2 + $0x8] sm:$0xff] %vm845, %v836
        %848 = vst.msk [vmem:[#allocation2 + $0x10] sm:$0xff] %vm845, %v838
        %vm849 = vcmask 1041152
        %850 = vst.msk [vmem:[#allocation2 + $0x18] sm:$0x1] %vm849, %v840
        %851 = vrot.lane.b32.xlu0 %v250, 64
        %v852 = vpop.permute.xlu0 %851
        %853 = vrot.lane.b32.xlu0 %v252, 64
        %v854 = vpop.permute.xlu0 %853
        %855 = vrot.lane.b32.xlu0 %v254, 64
        %v856 = vpop.permute.xlu0 %855
        %857 = vrot.lane.b32.xlu0 %v256, 64
        %v858 = vpop.permute.xlu0 %857
        %863 = vst.msk [vmem:[#allocation2 + $0x19] sm:$0xff] %vm845, %v852
        %864 = vst.msk [vmem:[#allocation2 + $0x21] sm:$0xff] %vm845, %v854
        %865 = vst.msk [vmem:[#allocation2 + $0x29] sm:$0xff] %vm845, %v856
        %866 = vst.msk [vmem:[#allocation2 + $0x31] sm:$0x1] %vm849, %v858
        %867 = vrot.lane.b32.xlu0 %v250, 32
        %v868 = vpop.permute.xlu0 %867
        %869 = vrot.lane.b32.xlu0 %v252, 32
        %v870 = vpop.permute.xlu0 %869
        %871 = vrot.lane.b32.xlu0 %v254, 32
        %v872 = vpop.permute.xlu0 %871
        %873 = vrot.lane.b32.xlu0 %v256, 32
        %v874 = vpop.permute.xlu0 %873
        %879 = vst.msk [vmem:[#allocation2 + $0x32] sm:$0xff] %vm845, %v868
        %880 = vst.msk [vmem:[#allocation2 + $0x3a] sm:$0xff] %vm845, %v870
        %881 = vst.msk [vmem:[#allocation2 + $0x42] sm:$0xff] %vm845, %v872
        %882 = vst.msk [vmem:[#allocation2 + $0x4a] sm:$0x1] %vm849, %v874
        %883 = vst.msk [vmem:[#allocation2 + $0x4b] sm:$0xff] %vm845, %v250
        %884 = vst.msk [vmem:[#allocation2 + $0x53] sm:$0xff] %vm845, %v252
        %885 = vst.msk [vmem:[#allocation2 + $0x5b] sm:$0xff] %vm845, %v254
        %886 = vst.msk [vmem:[#allocation2 + $0x63] sm:$0x1] %vm849, %v256
        %890 = vrot.lane.b32.xlu0 %v251, 96
        %v891 = vpop.permute.xlu0 %890
        %892 = vrot.lane.b32.xlu0 %v253, 96
        %v893 = vpop.permute.xlu0 %892
        %894 = vrot.lane.b32.xlu0 %v255, 96
        %v895 = vpop.permute.xlu0 %894
        %896 = vrot.lane.b32.xlu0 %v257, 96
        %v897 = vpop.permute.xlu0 %896
        %902 = vst.msk [vmem:[#allocation2 + $0x64] sm:$0xff] %vm845, %v891
        %903 = vst.msk [vmem:[#allocation2 + $0x6c] sm:$0xff] %vm845, %v893
        %904 = vst.msk [vmem:[#allocation2 + $0x74] sm:$0xff] %vm845, %v895
        %905 = vst.msk [vmem:[#allocation2 + $0x7c] sm:$0x1] %vm849, %v897
        %906 = vrot.lane.b32.xlu0 %v251, 64
        %v907 = vpop.permute.xlu0 %906
        %908 = vrot.lane.b32.xlu0 %v253, 64
        %v909 = vpop.permute.xlu0 %908
        %910 = vrot.lane.b32.xlu0 %v255, 64
        %v911 = vpop.permute.xlu0 %910
        %912 = vrot.lane.b32.xlu0 %v257, 64
        %v913 = vpop.permute.xlu0 %912
        %918 = vst.msk [vmem:[#allocation2 + $0x7d] sm:$0xff] %vm845, %v907
        %919 = vst.msk [vmem:[#allocation2 + $0x85] sm:$0xff] %vm845, %v909
        %920 = vst.msk [vmem:[#allocation2 + $0x8d] sm:$0xff] %vm845, %v911
        %921 = vst.msk [vmem:[#allocation2 + $0x95] sm:$0x1] %vm849, %v913
        %922 = vrot.lane.b32.xlu0 %v251, 32
        %v923 = vpop.permute.xlu0 %922
        %924 = vrot.lane.b32.xlu0 %v253, 32
        %v925 = vpop.permute.xlu0 %924
        %926 = vrot.lane.b32.xlu0 %v255, 32
        %v927 = vpop.permute.xlu0 %926
        %928 = vrot.lane.b32.xlu0 %v257, 32
        %v929 = vpop.permute.xlu0 %928
        %934 = vst.msk [vmem:[#allocation2 + $0x96] sm:$0xff] %vm845, %v923
        %935 = vst.msk [vmem:[#allocation2 + $0x9e] sm:$0xff] %vm845, %v925
        %936 = vst.msk [vmem:[#allocation2 + $0xa6] sm:$0xff] %vm845, %v927
        %937 = vst.msk [vmem:[#allocation2 + $0xae] sm:$0x1] %vm849, %v929
        %938 = vst.msk [vmem:[#allocation2 + $0xaf] sm:$0xff] %vm845, %v251
        %939 = vst.msk [vmem:[#allocation2 + $0xb7] sm:$0xff] %vm845, %v253
        %940 = vst.msk [vmem:[#allocation2 + $0xbf] sm:$0xff] %vm845, %v255
        %941 = vst.msk [vmem:[#allocation2 + $0xc7] sm:$0x1] %vm849, %v257
        %v942 = vld [vmem:[#allocation2] sm:$0xff]
        %v943 = vld [vmem:[#allocation2 + $0x8] sm:$0xff]
        %v944 = vld [vmem:[#allocation2 + $0x10] sm:$0xff]
        %v945 = vld [vmem:[#allocation2 + $0x18] sm:$0xff]
        %v946 = vld [vmem:[#allocation2 + $0x20] sm:$0xff]
        %v947 = vld [vmem:[#allocation2 + $0x28] sm:$0xff]
        %v948 = vld [vmem:[#allocation2 + $0x30] sm:$0xff]
        %v949 = vld [vmem:[#allocation2 + $0x38] sm:$0xff]
        %v950 = vld [vmem:[#allocation2 + $0x40] sm:$0xff]
        %v951 = vld [vmem:[#allocation2 + $0x48] sm:$0xff]
        %v952 = vld [vmem:[#allocation2 + $0x50] sm:$0xff]
        %v953 = vld [vmem:[#allocation2 + $0x58] sm:$0xff]
        %v954 = vld [vmem:[#allocation2 + $0x60] sm:$0xff]
        %v955 = vld [vmem:[#allocation2 + $0x68] sm:$0xff]
        %v956 = vld [vmem:[#allocation2 + $0x70] sm:$0xff]
        %v957 = vld [vmem:[#allocation2 + $0x78] sm:$0xff]
        %v958 = vld [vmem:[#allocation2 + $0x80] sm:$0xff]
        %v959 = vld [vmem:[#allocation2 + $0x88] sm:$0xff]
        %v960 = vld [vmem:[#allocation2 + $0x90] sm:$0xff]
        %v961 = vld [vmem:[#allocation2 + $0x98] sm:$0xff]
        %v962 = vld [vmem:[#allocation2 + $0xa0] sm:$0xff]
        %v963 = vld [vmem:[#allocation2 + $0xa8] sm:$0xff]
        %v964 = vld [vmem:[#allocation2 + $0xb0] sm:$0xff]
        %v965 = vld [vmem:[#allocation2 + $0xb8] sm:$0xff]
        %v966 = vld [vmem:[#allocation2 + $0xc0] sm:$0xff]
        %v967 = vld [vmem:[%s2] sm:$0xff]
        %v968 = vld [vmem:[%s2 + $0x8] sm:$0xff]
        %v969 = vld [vmem:[%s2 + $0x10] sm:$0xff]
        %v970 = vld [vmem:[%s2 + $0x18] sm:$0xff]
        %v971 = vld [vmem:[%s2 + $0x20] sm:$0xff]
        %v972 = vld [vmem:[%s2 + $0x28] sm:$0xff]
        %v973 = vld [vmem:[%s2 + $0x30] sm:$0xff]
        %v974 = vld [vmem:[%s2 + $0x38] sm:$0xff]
        %v975 = vld [vmem:[%s2 + $0x40] sm:$0xff]
        %v976 = vld [vmem:[%s2 + $0x48] sm:$0xff]
        %v977 = vld [vmem:[%s2 + $0x50] sm:$0xff]
        %v978 = vld [vmem:[%s2 + $0x58] sm:$0xff]
        %v979 = vld [vmem:[%s2 + $0x60] sm:$0xff]
        %v980 = vld [vmem:[%s2 + $0x68] sm:$0xff]
        %v981 = vld [vmem:[%s2 + $0x70] sm:$0xff]
        %v982 = vld [vmem:[%s2 + $0x78] sm:$0xff]
        %v983 = vld [vmem:[%s3] sm:$0x1]
        %v985 = vperm.slane %v983, 0
        %987 = vmatpush.msra.mxu0 %v982
        %988 = vmatpush.msra.mxu0 %v981
        %989 = vmatpush.msra.mxu0 %v980
        %990 = vmatpush.msra.mxu0 %v979
        %991 = vmatpush.msra.mxu0 %v978
        %992 = vmatpush.msra.mxu0 %v977
        %993 = vmatpush.msra.mxu0 %v976
        %994 = vmatpush.msra.mxu0 %v975
        %995 = vmatpush.msra.mxu0 %v974
        %996 = vmatpush.msra.mxu0 %v973
        %997 = vmatpush.msra.mxu0 %v972
        %998 = vmatpush.msra.mxu0 %v971
        %999 = vmatpush.msra.mxu0 %v970
        %1000 = vmatpush.msra.mxu0 %v969
        %1001 = vmatpush.msra.mxu0 %v968
        %1002 = vmatpush.msra.mxu0 %v967
        %1003 = vmatmul.f32.gmra.mxu0 %v942
        %v1004 = vpop.f32.mrf.mxu0
        %v1005 = vadd.f32 %v985, %v1004
        %1006 = vmatmul.f32.gmra.mxu0 %v943
        %v1007 = vpop.f32.mrf.mxu0
        %v1008 = vadd.f32 %v985, %v1007
        %1009 = vmatmul.f32.gmra.mxu0 %v944
        %v1010 = vpop.f32.mrf.mxu0
        %v1011 = vadd.f32 %v985, %v1010
        %1012 = vmatmul.f32.gmra.mxu0 %v945
        %v1013 = vpop.f32.mrf.mxu0
        %v1014 = vadd.f32 %v985, %v1013
        %1015 = vmatmul.f32.gmra.mxu0 %v946
        %v1016 = vpop.f32.mrf.mxu0
        %v1017 = vadd.f32 %v985, %v1016
        %1018 = vmatmul.f32.gmra.mxu0 %v947
        %v1019 = vpop.f32.mrf.mxu0
        %v1020 = vadd.f32 %v985, %v1019
        %1021 = vmatmul.f32.gmra.mxu0 %v948
        %v1022 = vpop.f32.mrf.mxu0
        %v1023 = vadd.f32 %v985, %v1022
        %1024 = vmatmul.f32.gmra.mxu0 %v949
        %v1025 = vpop.f32.mrf.mxu0
        %v1026 = vadd.f32 %v985, %v1025
        %1027 = vmatmul.f32.gmra.mxu0 %v950
        %v1028 = vpop.f32.mrf.mxu0
        %v1029 = vadd.f32 %v985, %v1028
        %1030 = vmatmul.f32.gmra.mxu0 %v951
        %v1031 = vpop.f32.mrf.mxu0
        %v1032 = vadd.f32 %v985, %v1031
        %1033 = vmatmul.f32.gmra.mxu0 %v952
        %v1034 = vpop.f32.mrf.mxu0
        %v1035 = vadd.f32 %v985, %v1034
        %1036 = vmatmul.f32.gmra.mxu0 %v953
        %v1037 = vpop.f32.mrf.mxu0
        %v1038 = vadd.f32 %v985, %v1037
        %1039 = vmatmul.f32.gmra.mxu0 %v954
        %v1040 = vpop.f32.mrf.mxu0
        %v1041 = vadd.f32 %v985, %v1040
        %1042 = vmatmul.f32.gmra.mxu0 %v955
        %v1043 = vpop.f32.mrf.mxu0
        %v1044 = vadd.f32 %v985, %v1043
        %1045 = vmatmul.f32.gmra.mxu0 %v956
        %v1046 = vpop.f32.mrf.mxu0
        %v1047 = vadd.f32 %v985, %v1046
        %1048 = vmatmul.f32.gmra.mxu0 %v957
        %v1049 = vpop.f32.mrf.mxu0
        %v1050 = vadd.f32 %v985, %v1049
        %1051 = vmatmul.f32.gmra.mxu0 %v958
        %v1052 = vpop.f32.mrf.mxu0
        %v1053 = vadd.f32 %v985, %v1052
        %1054 = vmatmul.f32.gmra.mxu0 %v959
        %v1055 = vpop.f32.mrf.mxu0
        %v1056 = vadd.f32 %v985, %v1055
        %1057 = vmatmul.f32.gmra.mxu0 %v960
        %v1058 = vpop.f32.mrf.mxu0
        %v1059 = vadd.f32 %v985, %v1058
        %1060 = vmatmul.f32.gmra.mxu0 %v961
        %v1061 = vpop.f32.mrf.mxu0
        %v1062 = vadd.f32 %v985, %v1061
        %1063 = vmatmul.f32.gmra.mxu0 %v962
        %v1064 = vpop.f32.mrf.mxu0
        %v1065 = vadd.f32 %v985, %v1064
        %1066 = vmatmul.f32.gmra.mxu0 %v963
        %v1067 = vpop.f32.mrf.mxu0
        %v1068 = vadd.f32 %v985, %v1067
        %1069 = vmatmul.f32.gmra.mxu0 %v964
        %v1070 = vpop.f32.mrf.mxu0
        %v1071 = vadd.f32 %v985, %v1070
        %1072 = vmatmul.f32.gmra.mxu0 %v965
        %v1073 = vpop.f32.mrf.mxu0
        %v1074 = vadd.f32 %v985, %v1073
        %1075 = vmatmul.f32.gmra.mxu0 %v966
        %v1076 = vpop.f32.mrf.mxu0
        %v1077 = vadd.f32 %v985, %v1076
        %1078 = vdwg.mxu0
        %v1079 = vmax.f32 %v1005, 0.0
        %v1080 = vmax.f32 %v1008, 0.0
        %v1081 = vmax.f32 %v1011, 0.0
        %v1082 = vmax.f32 %v1014, 0.0
        %v1083 = vmax.f32 %v1017, 0.0
        %v1084 = vmax.f32 %v1020, 0.0
        %v1085 = vmax.f32 %v1023, 0.0
        %v1086 = vmax.f32 %v1026, 0.0
        %v1087 = vmax.f32 %v1029, 0.0
        %v1088 = vmax.f32 %v1032, 0.0
        %v1089 = vmax.f32 %v1035, 0.0
        %v1090 = vmax.f32 %v1038, 0.0
        %v1091 = vmax.f32 %v1041, 0.0
        %v1092 = vmax.f32 %v1044, 0.0
        %v1093 = vmax.f32 %v1047, 0.0
        %v1094 = vmax.f32 %v1050, 0.0
        %v1095 = vmax.f32 %v1053, 0.0
        %v1096 = vmax.f32 %v1056, 0.0
        %v1097 = vmax.f32 %v1059, 0.0
        %v1098 = vmax.f32 %v1062, 0.0
        %v1099 = vmax.f32 %v1065, 0.0
        %v1100 = vmax.f32 %v1068, 0.0
        %v1101 = vmax.f32 %v1071, 0.0
        %v1102 = vmax.f32 %v1074, 0.0
        %v1103 = vmax.f32 %v1077, 0.0
        %vm1104 = vcmask 523264
        %1105 = vst.msk [vmem:[%s249] sm:$0xff] %vm1104, %v1079
        %1106 = vst.msk [vmem:[%s249 + $0x8] sm:$0xff] %vm1104, %v1080
        %1107 = vst.msk [vmem:[%s249 + $0x10] sm:$0xff] %vm1104, %v1081
        %1108 = vst.msk [vmem:[%s249 + $0x18] sm:$0xff] %vm1104, %v1082
        %1109 = vst.msk [vmem:[%s249 + $0x20] sm:$0xff] %vm1104, %v1083
        %1110 = vst.msk [vmem:[%s249 + $0x28] sm:$0xff] %vm1104, %v1084
        %1111 = vst.msk [vmem:[%s249 + $0x30] sm:$0xff] %vm1104, %v1085
        %1112 = vst.msk [vmem:[%s249 + $0x38] sm:$0xff] %vm1104, %v1086
        %1113 = vst.msk [vmem:[%s249 + $0x40] sm:$0xff] %vm1104, %v1087
        %1114 = vst.msk [vmem:[%s249 + $0x48] sm:$0xff] %vm1104, %v1088
        %1115 = vst.msk [vmem:[%s249 + $0x50] sm:$0xff] %vm1104, %v1089
        %1116 = vst.msk [vmem:[%s249 + $0x58] sm:$0xff] %vm1104, %v1090
        %1117 = vst.msk [vmem:[%s249 + $0x60] sm:$0xff] %vm1104, %v1091
        %1118 = vst.msk [vmem:[%s249 + $0x68] sm:$0xff] %vm1104, %v1092
        %1119 = vst.msk [vmem:[%s249 + $0x70] sm:$0xff] %vm1104, %v1093
        %1120 = vst.msk [vmem:[%s249 + $0x78] sm:$0xff] %vm1104, %v1094
        %1121 = vst.msk [vmem:[%s249 + $0x80] sm:$0xff] %vm1104, %v1095
        %1122 = vst.msk [vmem:[%s249 + $0x88] sm:$0xff] %vm1104, %v1096
        %1123 = vst.msk [vmem:[%s249 + $0x90] sm:$0xff] %vm1104, %v1097
        %1124 = vst.msk [vmem:[%s249 + $0x98] sm:$0xff] %vm1104, %v1098
        %1125 = vst.msk [vmem:[%s249 + $0xa0] sm:$0xff] %vm1104, %v1099
        %1126 = vst.msk [vmem:[%s249 + $0xa8] sm:$0xff] %vm1104, %v1100
        %1127 = vst.msk [vmem:[%s249 + $0xb0] sm:$0xff] %vm1104, %v1101
        %1128 = vst.msk [vmem:[%s249 + $0xb8] sm:$0xff] %vm1104, %v1102
        %1129 = vst.msk [vmem:[%s249 + $0xc0] sm:$0xff] %vm1104, %v1103
        %p1130 = scmp.lt.s32.totalorder %s16, 1
        %s1131 = scalar_select %p1130, %s16, 1
        %s1132 = smul.addr %s1131, 25
        %s1133 = smul.addr %s1132, 8
        %s1134 = scalar_lea.vmem %s4, %s1133
        // Predicated region
        $region64: #{tpu_custom_call.1} parent=54 // pred_check
          %p1135 = pneg %p123
        $region65: #{tpu_custom_call.1} parent=54 // pred_check_branch
          %1137 = sbr.rel (%p1135) target = $region67
        $region66: #{tpu_custom_call.1} parent=54 // pred_region
          _
        $region67: #{tpu_custom_call.1} parent=54 // pred_fallthru
          _
      $region55: #{tpu_custom_call.1} parent=5 // pred_fallthru
        _
      %p1138 = scmp.le.s32.totalorder 2, %s11
      // Predicated region
      $region68: #{tpu_custom_call.1} parent=5 // pred_check
        %p1139 = pneg %p1138
      $region69: #{tpu_custom_call.1} parent=5 // pred_check_branch
        %1141 = sbr.rel (%p1139) target = $region71
      $region70: #{tpu_custom_call.1} parent=5 // pred_region
        %s1142 = ssub.s32 %s11, 2
        // Predicated region
        $region72: #{tpu_custom_call.1} parent=70 // pred_check
          %p1143 = pneg %p129
        $region73: #{tpu_custom_call.1} parent=70 // pred_check_branch
          %1145 = sbr.rel (%p1143) target = $region75
        $region74: #{tpu_custom_call.1} parent=70 // pred_region
          %p1146 = scmp.lt.s32.totalorder %s17, 1
          %s1147 = scalar_select %p1146, %s17, 1
          %s1148 = smul.addr %s1147, 25
          %s1149 = smul.addr %s1148, 8
          %s1150 = scalar_lea.vmem %s4, %s1149
        $region75: #{tpu_custom_call.1} parent=70 // pred_fallthru
          _
      $region71: #{tpu_custom_call.1} parent=5 // pred_fallthru
        _
    $region6: #{tpu_custom_call.1} parent=1 // loop_footer
      %s15 = sadd.s32 1, %s11
    $region7: #{tpu_custom_call.1} parent=1 // loop_footer_branch
      %10 = sbr.rel target = $region3
    $region8: #{tpu_custom_call.1} parent=1 // loop_exit
      _
    %1151 = vsyncpa [#allocation5], 1
    %s1152 = scalar_lea.sflag [#allocation5], 1
    %1153 = vsyncpa %s1152, 1

</llo_original>
